<compile_context>
chip_gen: v6e
topology: v6e:2x2x1
jax: 0.10.0
libtpu: 0.0.40
codegen_flags: <defaults>
</compile_context>

<pallas_src>
import jax
import jax.numpy as jnp
from jax import lax
from jax.experimental import pallas as pl
from jax.experimental.pallas import tpu as pltpu

EPS = 1e-5


# --------------------------------------------------------------------------------------
# Pass 1: 2x2 max-pool + conv1 (3x3, pad=1) + bias, emits pre-BN activation + stats
# --------------------------------------------------------------------------------------
def _pool_conv1_kernel(x_ref, w_ref, b_ref, y_ref, st_ref, scr_ref):
    _, H, W, Cin = x_ref.shape
    Hh, Wh = H // 2, W // 2
    Cp = w_ref.shape[-1]

    # ---- 2x2 max pool, stride 2 ----
    xr = x_ref[0].reshape(Hh, 2, W, Cin)
    a = jnp.maximum(xr[:, 0, :, :], xr[:, 1, :, :])        # (Hh, W, Cin)
    t = a.reshape(Hh, Wh, 2, Cin)
    pooled = jnp.maximum(t[:, :, 0, :], t[:, :, 1, :])     # (Hh, Wh, Cin)

    # ---- stage into padded scratch: zero only the 1-wide halo, write interior once ----
    scr_ref[0:1, :, :] = jnp.zeros((1, Wh + 2, Cin), jnp.float32)
    scr_ref[Hh + 1:Hh + 2, :, :] = jnp.zeros((1, Wh + 2, Cin), jnp.float32)
    scr_ref[1:Hh + 1, 0:1, :] = jnp.zeros((Hh, 1, Cin), jnp.float32)
    scr_ref[1:Hh + 1, Wh + 1:Wh + 2, :] = jnp.zeros((Hh, 1, Cin), jnp.float32)
    scr_ref[1:Hh + 1, 1:Wh + 1, :] = pooled

    # ---- conv1 as a single im2col matmul: (Hh*Wh, 9*Cin) x (9*Cin, Cp) ----
    patches = jnp.concatenate(
        [scr_ref[kh:kh + Hh, kw:kw + Wh, :] for kh in range(3) for kw in range(3)],
        axis=-1).reshape(Hh * Wh, 9 * Cin)
    y = jnp.dot(patches, w_ref[...], preferred_element_type=jnp.float32) + b_ref[...]

    y_ref[0] = y.reshape(Hh, Wh, Cp)
    # per-sample BN partials (sum, sum of squares) per channel, single 2-row store
    st_ref[0] = jnp.concatenate(
        [jnp.sum(y, axis=0, keepdims=True),
         jnp.sum(y * y, axis=0, keepdims=True)], axis=0)


# --------------------------------------------------------------------------------------
# Pass 2: BN1 (precomputed scale/shift) + ReLU + conv2 (3x3, pad=1) + bias, emits stats
# --------------------------------------------------------------------------------------
def _bn_relu_conv2_kernel(y1_ref, sc_ref, sh_ref, w_ref, b_ref, y2_ref, st_ref, scr_ref):
    _, Hh, Wh, Cp = y1_ref.shape

    h = jnp.maximum(y1_ref[0] * sc_ref[...] + sh_ref[...], 0.0)   # (Hh, Wh, Cp)

    scr_ref[0:1, :, :] = jnp.zeros((1, Wh + 2, Cp), jnp.float32)
    scr_ref[Hh + 1:Hh + 2, :, :] = jnp.zeros((1, Wh + 2, Cp), jnp.float32)
    scr_ref[1:Hh + 1, 0:1, :] = jnp.zeros((Hh, 1, Cp), jnp.float32)
    scr_ref[1:Hh + 1, Wh + 1:Wh + 2, :] = jnp.zeros((Hh, 1, Cp), jnp.float32)
    scr_ref[1:Hh + 1, 1:Wh + 1, :] = h

    patches = jnp.concatenate(
        [scr_ref[kh:kh + Hh, kw:kw + Wh, :] for kh in range(3) for kw in range(3)],
        axis=-1).reshape(Hh * Wh, 9 * Cp)
    y = jnp.dot(patches, w_ref[...], preferred_element_type=jnp.float32) + b_ref[...]

    y2_ref[0] = y.reshape(Hh, Wh, Cp)
    st_ref[0] = jnp.concatenate(
        [jnp.sum(y, axis=0, keepdims=True),
         jnp.sum(y * y, axis=0, keepdims=True)], axis=0)


# --------------------------------------------------------------------------------------
# Pass 3: BN2 (precomputed scale/shift) + ReLU, writing only the real Cout channels
# --------------------------------------------------------------------------------------
def _bn_relu_kernel(y2_ref, sc_ref, sh_ref, o_ref):
    cout = o_ref.shape[-1]
    h = jnp.maximum(y2_ref[0] * sc_ref[...] + sh_ref[...], 0.0)
    o_ref[0] = h[..., :cout]


# --------------------------------------------------------------------------------------
# Wrapper
# --------------------------------------------------------------------------------------
def down_forward(x_nchw, params):
    """x_nchw: (N, Cin, H, W) float32. Returns (N, Cout, H//2, W//2)."""
    w1, b1, g1, be1, w2, b2, g2, be2 = params
    N, Cin, H, W = x_nchw.shape
    Cout = w1.shape[-1]
    Hh, Wh = H // 2, W // 2
    Cp = ((Cout + 127) // 128) * 128          # lane-dense padded channel count

    x_nhwc = jnp.transpose(x_nchw, (0, 2, 3, 1)).astype(jnp.float32)

    def padc(v):                               # pad per-channel vector to Cp (zeros)
        return jnp.pad(v.astype(jnp.float32), (0, Cp - Cout))

    # im2col weight layout: row index = (kh*3 + kw) * Cin + cin
    w1m = jnp.pad(w1.astype(jnp.float32),
                  ((0, 0), (0, 0), (0, 0), (0, Cp - Cout))).reshape(9 * Cin, Cp)
    w2m = jnp.pad(w2.astype(jnp.float32),
                  ((0, 0), (0, 0), (0, Cp - Cout), (0, Cp - Cout))).reshape(9 * Cp, Cp)
    b1p = padc(b1).reshape(1, Cp)
    b2p = padc(b2).reshape(1, Cp)
    g1p, be1p = padc(g1), padc(be1)
    g2p, be2p = padc(g2), padc(be2)

    cparams = pltpu.CompilerParams(
        dimension_semantics=("parallel",),
        vmem_limit_bytes=64 * 1024 * 1024,
    )

    # -------- pass 1: pool + conv1 --------
    y1, st1 = pl.pallas_call(
        _pool_conv1_kernel,
        grid=(N,),
        in_specs=[
            pl.BlockSpec((1, H, W, Cin), lambda n: (n, 0, 0, 0)),
            pl.BlockSpec((9 * Cin, Cp), lambda n: (0, 0)),
            pl.BlockSpec((1, Cp), lambda n: (0, 0)),
        ],
        out_specs=(
            pl.BlockSpec((1, Hh, Wh, Cp), lambda n: (n, 0, 0, 0)),
            pl.BlockSpec((1, 2, Cp), lambda n: (n, 0, 0)),
        ),
        out_shape=(
            jax.ShapeDtypeStruct((N, Hh, Wh, Cp), jnp.float32),
            jax.ShapeDtypeStruct((N, 2, Cp), jnp.float32),
        ),
        scratch_shapes=[pltpu.VMEM((Hh + 2, Wh + 2, Cin), jnp.float32)],
        compiler_params=cparams,
    )(x_nhwc, w1m, b1p)

    count = float(N * Hh * Wh)
    mean1 = jnp.sum(st1[:, 0, :], axis=0) / count
    var1 = jnp.sum(st1[:, 1, :], axis=0) / count - mean1 * mean1
    inv1 = lax.rsqrt(var1 + EPS)
    scale1 = (g1p * inv1).reshape(1, Cp)
    shift1 = (be1p - mean1 * g1p * inv1).reshape(1, Cp)

    # -------- pass 2: BN1 + ReLU + conv2 --------
    y2, st2 = pl.pallas_call(
        _bn_relu_conv2_kernel,
        grid=(N,),
        in_specs=[
            pl.BlockSpec((1, Hh, Wh, Cp), lambda n: (n, 0, 0, 0)),
            pl.BlockSpec((1, Cp), lambda n: (0, 0)),
            pl.BlockSpec((1, Cp), lambda n: (0, 0)),
            pl.BlockSpec((9 * Cp, Cp), lambda n: (0, 0)),
            pl.BlockSpec((1, Cp), lambda n: (0, 0)),
        ],
        out_specs=(
            pl.BlockSpec((1, Hh, Wh, Cp), lambda n: (n, 0, 0, 0)),
            pl.BlockSpec((1, 2, Cp), lambda n: (n, 0, 0)),
        ),
        out_shape=(
            jax.ShapeDtypeStruct((N, Hh, Wh, Cp), jnp.float32),
            jax.ShapeDtypeStruct((N, 2, Cp), jnp.float32),
        ),
        scratch_shapes=[pltpu.VMEM((Hh + 2, Wh + 2, Cp), jnp.float32)],
        compiler_params=cparams,
    )(y1, scale1, shift1, w2m, b2p)

    mean2 = jnp.sum(st2[:, 0, :], axis=0) / count
    var2 = jnp.sum(st2[:, 1, :], axis=0) / count - mean2 * mean2
    inv2 = lax.rsqrt(var2 + EPS)
    scale2 = (g2p * inv2).reshape(1, Cp)
    shift2 = (be2p - mean2 * g2p * inv2).reshape(1, Cp)

    # -------- pass 3: BN2 + ReLU (channel slice fused: only Cout channels written) ----
    out_nhwc = pl.pallas_call(
        _bn_relu_kernel,
        grid=(N,),
        in_specs=[
            pl.BlockSpec((1, Hh, Wh, Cp), lambda n: (n, 0, 0, 0)),
            pl.BlockSpec((1, Cp), lambda n: (0, 0)),
            pl.BlockSpec((1, Cp), lambda n: (0, 0)),
        ],
        out_specs=pl.BlockSpec((1, Hh, Wh, Cout), lambda n: (n, 0, 0, 0)),
        out_shape=jax.ShapeDtypeStruct((N, Hh, Wh, Cout), jnp.float32),
        compiler_params=cparams,
    )(y2, scale2, shift2)

    return jnp.transpose(out_nhwc, (0, 3, 1, 2))     # back to NCHW


# --------------------------------------------------------------------------------------
# Pure-JAX reference (mirrors PyTorch train-mode forward of `down`)
# --------------------------------------------------------------------------------------
def down_reference(x_nchw, params):
    w1, b1, g1, be1, w2, b2, g2, be2 = params

    x = lax.reduce_window(x_nchw, -jnp.inf, lax.max,
                          (1, 1, 2, 2), (1, 1, 2, 2), "VALID")

    def conv_bn_relu(x, w_hwio, b, g, be):
        w_oihw = jnp.transpose(w_hwio, (3, 2, 0, 1))
        y = lax.conv_general_dilated(
            x, w_oihw, window_strides=(1, 1), padding="SAME",
            dimension_numbers=("NCHW", "OIHW", "NCHW"),
            precision=lax.Precision.HIGHEST)
        y = y + b[None, :, None, None]
        mean = jnp.mean(y, axis=(0, 2, 3), keepdims=True)
        var = jnp.var(y, axis=(0, 2, 3), keepdims=True)   # biased, as PyTorch normalizes
        y = (y - mean) * lax.rsqrt(var + EPS)
        y = y * g[None, :, None, None] + be[None, :, None, None]
        return jnp.maximum(y, 0.0)

    y = conv_bn_relu(x, w1, b1, g1, be1)
    y = conv_bn_relu(y, w2, b2, g2, be2)
    return y


def make_params(key, in_ch, out_ch):
    k1, k2, k3, k4 = jax.random.split(key, 4)
    w1 = jax.random.normal(k1, (3, 3, in_ch, out_ch), jnp.float32) * 0.2   # HWIO
    b1 = jax.random.normal(k2, (out_ch,), jnp.float32) * 0.1
    w2 = jax.random.normal(k3, (3, 3, out_ch, out_ch), jnp.float32) * 0.2  # HWIO
    b2 = jax.random.normal(k4, (out_ch,), jnp.float32) * 0.1
    # PyTorch BatchNorm2d defaults: gamma=1, beta=0
    g1 = jnp.ones((out_ch,), jnp.float32)
    be1 = jnp.zeros((out_ch,), jnp.float32)
    g2 = jnp.ones((out_ch,), jnp.float32)
    be2 = jnp.zeros((out_ch,), jnp.float32)
    return (w1, b1, g1, be1, w2, b2, g2, be2)


if __name__ == "__main__":
    key = jax.random.PRNGKey(0)
    kx, kp = jax.random.split(key)

    N, in_ch, out_ch, H, W = 2, 4, 8, 16, 16
    x = jax.random.normal(kx, (N, in_ch, H, W), jnp.float32)
    params = make_params(kp, in_ch, out_ch)

    out = jax.block_until_ready(down_forward(x, params))
    ref = jax.block_until_ready(down_reference(x, params))

    assert out.shape == (N, out_ch, H // 2, W // 2), out.shape
    err = jnp.max(jnp.abs(out - ref))
    assert jnp.allclose(out, ref, atol=1e-3, rtol=1e-3), f"max abs err = {err}"
    print("KERNEL_OK")
</pallas_src>

<mosaic_0001>
module attributes {stable_mosaic.version = 11 : i64} {
  func.func @_pool_conv1_kernel(%arg0: i32, %arg1: memref<1x16x16x4xf32, #tpu.memory_space<vmem>>, %arg2: memref<36x128xf32, #tpu.memory_space<vmem>>, %arg3: memref<1x128xf32, #tpu.memory_space<vmem>>, %arg4: memref<1x8x8x128xf32, #tpu.memory_space<vmem>>, %arg5: memref<1x2x128xf32, #tpu.memory_space<vmem>>, %arg6: memref<10x10x4xf32, #tpu.memory_space<vmem>>) attributes {dimension_semantics = [#tpu.dimension_semantics<parallel>], iteration_bounds = array<i64: 2>, scalar_prefetch = 0 : i64, scratch_operands = 1 : i64, tpu.core_type = #tpu.core_type<tc>, window_params = [{transform_indices = @transform_0, window_bounds = array<i64: 1, 16, 16, 4>}, {pipeline_mode = #tpu.pipeline_mode<synchronous>, transform_indices = @transform_1, window_bounds = array<i64: 36, 128>}, {pipeline_mode = #tpu.pipeline_mode<synchronous>, transform_indices = @transform_2, window_bounds = array<i64: 1, 128>}, {transform_indices = @transform_3, window_bounds = array<i64: 1, 8, 8, 128>}, {transform_indices = @transform_4, window_bounds = array<i64: 1, 2, 128>}]} {
    %c0 = arith.constant 0 : index
    %c0_0 = arith.constant 0 : index
    %c0_1 = arith.constant 0 : index
    %c0_2 = arith.constant 0 : index
    %0 = vector.load %arg1[%c0, %c0_0, %c0_1, %c0_2] : memref<1x16x16x4xf32, #tpu.memory_space<vmem>>, vector<1x16x16x4xf32>
    %1 = vector.shape_cast %0 : vector<1x16x16x4xf32> to vector<16x16x4xf32>
    %2 = vector.shape_cast %1 : vector<16x16x4xf32> to vector<8x2x16x4xf32>
    %3 = vector.extract_strided_slice %2 {offsets = [0, 0, 0, 0], sizes = [8, 1, 16, 4], strides = [1, 1, 1, 1]} : vector<8x2x16x4xf32> to vector<8x1x16x4xf32>
    %4 = vector.shape_cast %3 : vector<8x1x16x4xf32> to vector<8x16x4xf32>
    %5 = vector.extract_strided_slice %2 {offsets = [0, 1, 0, 0], sizes = [8, 1, 16, 4], strides = [1, 1, 1, 1]} : vector<8x2x16x4xf32> to vector<8x1x16x4xf32>
    %6 = vector.shape_cast %5 : vector<8x1x16x4xf32> to vector<8x16x4xf32>
    %7 = arith.maximumf %4, %6 : vector<8x16x4xf32>
    %8 = vector.shape_cast %7 : vector<8x16x4xf32> to vector<8x8x2x4xf32>
    %9 = vector.extract_strided_slice %8 {offsets = [0, 0, 0, 0], sizes = [8, 8, 1, 4], strides = [1, 1, 1, 1]} : vector<8x8x2x4xf32> to vector<8x8x1x4xf32>
    %10 = vector.shape_cast %9 : vector<8x8x1x4xf32> to vector<8x8x4xf32>
    %11 = vector.extract_strided_slice %8 {offsets = [0, 0, 1, 0], sizes = [8, 8, 1, 4], strides = [1, 1, 1, 1]} : vector<8x8x2x4xf32> to vector<8x8x1x4xf32>
    %12 = vector.shape_cast %11 : vector<8x8x1x4xf32> to vector<8x8x4xf32>
    %13 = arith.maximumf %10, %12 : vector<8x8x4xf32>
    %cst = arith.constant 0.000000e+00 : f32
    %14 = vector.broadcast %cst : f32 to vector<1x10x4xf32>
    %c0_3 = arith.constant 0 : index
    %c0_4 = arith.constant 0 : index
    %c0_5 = arith.constant 0 : index
    %15 = vector.load %arg6[%c0_3, %c0_4, %c0_5] : memref<10x10x4xf32, #tpu.memory_space<vmem>>, vector<1x10x4xf32>
    tpu.vector_store %arg6[%c0_3, %c0_4, %c0_5], %14 {strides = array<i32>} : memref<10x10x4xf32, #tpu.memory_space<vmem>>, vector<1x10x4xf32>,
    %cst_6 = arith.constant 0.000000e+00 : f32
    %16 = vector.broadcast %cst_6 : f32 to vector<1x10x4xf32>
    %c9 = arith.constant 9 : index
    %c0_7 = arith.constant 0 : index
    %c0_8 = arith.constant 0 : index
    %17 = vector.load %arg6[%c9, %c0_7, %c0_8] : memref<10x10x4xf32, #tpu.memory_space<vmem>>, vector<1x10x4xf32>
    tpu.vector_store %arg6[%c9, %c0_7, %c0_8], %16 {strides = array<i32>} : memref<10x10x4xf32, #tpu.memory_space<vmem>>, vector<1x10x4xf32>,
    %cst_9 = arith.constant 0.000000e+00 : f32
    %18 = vector.broadcast %cst_9 : f32 to vector<8x1x4xf32>
    %c1 = arith.constant 1 : index
    %c0_10 = arith.constant 0 : index
    %c0_11 = arith.constant 0 : index
    %19 = vector.load %arg6[%c1, %c0_10, %c0_11] : memref<10x10x4xf32, #tpu.memory_space<vmem>>, vector<8x1x4xf32>
    tpu.vector_store %arg6[%c1, %c0_10, %c0_11], %18 {strides = array<i32>} : memref<10x10x4xf32, #tpu.memory_space<vmem>>, vector<8x1x4xf32>,
    %cst_12 = arith.constant 0.000000e+00 : f32
    %20 = vector.broadcast %cst_12 : f32 to vector<8x1x4xf32>
    %c1_13 = arith.constant 1 : index
    %c9_14 = arith.constant 9 : index
    %c0_15 = arith.constant 0 : index
    %21 = vector.load %arg6[%c1_13, %c9_14, %c0_15] : memref<10x10x4xf32, #tpu.memory_space<vmem>>, vector<8x1x4xf32>
    tpu.vector_store %arg6[%c1_13, %c9_14, %c0_15], %20 {strides = array<i32>} : memref<10x10x4xf32, #tpu.memory_space<vmem>>, vector<8x1x4xf32>,
    %c1_16 = arith.constant 1 : index
    %c1_17 = arith.constant 1 : index
    %c0_18 = arith.constant 0 : index
    %22 = vector.load %arg6[%c1_16, %c1_17, %c0_18] : memref<10x10x4xf32, #tpu.memory_space<vmem>>, vector<8x8x4xf32>
    tpu.vector_store %arg6[%c1_16, %c1_17, %c0_18], %13 {strides = array<i32>} : memref<10x10x4xf32, #tpu.memory_space<vmem>>, vector<8x8x4xf32>,
    %c0_19 = arith.constant 0 : index
    %c0_20 = arith.constant 0 : index
    %c0_21 = arith.constant 0 : index
    %23 = vector.load %arg6[%c0_19, %c0_20, %c0_21] : memref<10x10x4xf32, #tpu.memory_space<vmem>>, vector<8x8x4xf32>
    %c0_22 = arith.constant 0 : index
    %c1_23 = arith.constant 1 : index
    %c0_24 = arith.constant 0 : index
    %24 = vector.load %arg6[%c0_22, %c1_23, %c0_24] : memref<10x10x4xf32, #tpu.memory_space<vmem>>, vector<8x8x4xf32>
    %c0_25 = arith.constant 0 : index
    %c2 = arith.constant 2 : index
    %c0_26 = arith.constant 0 : index
    %25 = vector.load %arg6[%c0_25, %c2, %c0_26] : memref<10x10x4xf32, #tpu.memory_space<vmem>>, vector<8x8x4xf32>
    %c1_27 = arith.constant 1 : index
    %c0_28 = arith.constant 0 : index
    %c0_29 = arith.constant 0 : index
    %26 = vector.load %arg6[%c1_27, %c0_28, %c0_29] : memref<10x10x4xf32, #tpu.memory_space<vmem>>, vector<8x8x4xf32>
    %c1_30 = arith.constant 1 : index
    %c1_31 = arith.constant 1 : index
    %c0_32 = arith.constant 0 : index
    %27 = vector.load %arg6[%c1_30, %c1_31, %c0_32] : memref<10x10x4xf32, #tpu.memory_space<vmem>>, vector<8x8x4xf32>
    %c1_33 = arith.constant 1 : index
    %c2_34 = arith.constant 2 : index
    %c0_35 = arith.constant 0 : index
    %28 = vector.load %arg6[%c1_33, %c2_34, %c0_35] : memref<10x10x4xf32, #tpu.memory_space<vmem>>, vector<8x8x4xf32>
    %c2_36 = arith.constant 2 : index
    %c0_37 = arith.constant 0 : index
    %c0_38 = arith.constant 0 : index
    %29 = vector.load %arg6[%c2_36, %c0_37, %c0_38] : memref<10x10x4xf32, #tpu.memory_space<vmem>>, vector<8x8x4xf32>
    %c2_39 = arith.constant 2 : index
    %c1_40 = arith.constant 1 : index
    %c0_41 = arith.constant 0 : index
    %30 = vector.load %arg6[%c2_39, %c1_40, %c0_41] : memref<10x10x4xf32, #tpu.memory_space<vmem>>, vector<8x8x4xf32>
    %c2_42 = arith.constant 2 : index
    %c2_43 = arith.constant 2 : index
    %c0_44 = arith.constant 0 : index
    %31 = vector.load %arg6[%c2_42, %c2_43, %c0_44] : memref<10x10x4xf32, #tpu.memory_space<vmem>>, vector<8x8x4xf32>
    %32 = tpu.concatenate %23, %24, %25, %26, %27, %28, %29, %30, %31 in 2 : vector<8x8x4xf32>, vector<8x8x4xf32>, vector<8x8x4xf32>, vector<8x8x4xf32>, vector<8x8x4xf32>, vector<8x8x4xf32>, vector<8x8x4xf32>, vector<8x8x4xf32>, vector<8x8x4xf32> -> vector<8x8x36xf32>
    %33 = vector.shape_cast %32 : vector<8x8x36xf32> to vector<64x36xf32>
    %c0_45 = arith.constant 0 : index
    %c0_46 = arith.constant 0 : index
    %34 = vector.load %arg2[%c0_45, %c0_46] : memref<36x128xf32, #tpu.memory_space<vmem>>, vector<36x128xf32>
    %cst_47 = arith.constant dense<0.000000e+00> : vector<64x128xf32>
    %35 = tpu.matmul %33, %34, %cst_47 {dimension_numbers = #tpu.dot_dimension_numbers<[1], [0], [0], [1], [0, 0, 1, 1], [], []>} : vector<64x36xf32>, vector<36x128xf32>, vector<64x128xf32> -> vector<64x128xf32>
    %c0_48 = arith.constant 0 : index
    %c0_49 = arith.constant 0 : index
    %36 = vector.load %arg3[%c0_48, %c0_49] : memref<1x128xf32, #tpu.memory_space<vmem>>, vector<1x128xf32>
    %37 = vector.broadcast %36 : vector<1x128xf32> to vector<64x128xf32>
    %38 = arith.addf %35, %37 : vector<64x128xf32>
    %39 = vector.shape_cast %38 : vector<64x128xf32> to vector<8x8x128xf32>
    %c0_50 = arith.constant 0 : index
    %c0_51 = arith.constant 0 : index
    %c0_52 = arith.constant 0 : index
    %c0_53 = arith.constant 0 : index
    %40 = vector.load %arg4[%c0_50, %c0_51, %c0_52, %c0_53] : memref<1x8x8x128xf32, #tpu.memory_space<vmem>>, vector<1x8x8x128xf32>
    %41 = vector.shape_cast %40 : vector<1x8x8x128xf32> to vector<8x8x128xf32>
    %42 = vector.shape_cast %39 : vector<8x8x128xf32> to vector<1x8x8x128xf32>
    tpu.vector_store %arg4[%c0_50, %c0_51, %c0_52, %c0_53], %42 {strides = array<i32>} : memref<1x8x8x128xf32, #tpu.memory_space<vmem>>, vector<1x8x8x128xf32>,
    %cst_54 = arith.constant dense<0.000000e+00> : vector<128xf32>
    %43 = vector.multi_reduction <add>, %38, %cst_54 [0] : vector<64x128xf32> to vector<128xf32>
    %44 = vector.shape_cast %43 : vector<128xf32> to vector<1x128xf32>
    %45 = arith.mulf %38, %38 : vector<64x128xf32>
    %cst_55 = arith.constant dense<0.000000e+00> : vector<128xf32>
    %46 = vector.multi_reduction <add>, %45, %cst_55 [0] : vector<64x128xf32> to vector<128xf32>
    %47 = vector.shape_cast %46 : vector<128xf32> to vector<1x128xf32>
    %48 = tpu.concatenate %44, %47 in 0 : vector<1x128xf32>, vector<1x128xf32> -> vector<2x128xf32>
    %c0_56 = arith.constant 0 : index
    %c0_57 = arith.constant 0 : index
    %c0_58 = arith.constant 0 : index
    %49 = vector.load %arg5[%c0_56, %c0_57, %c0_58] : memref<1x2x128xf32, #tpu.memory_space<vmem>>, vector<1x2x128xf32>
    %50 = vector.shape_cast %49 : vector<1x2x128xf32> to vector<2x128xf32>
    %51 = vector.shape_cast %48 : vector<2x128xf32> to vector<1x2x128xf32>
    tpu.vector_store %arg5[%c0_56, %c0_57, %c0_58], %51 {strides = array<i32>} : memref<1x2x128xf32, #tpu.memory_space<vmem>>, vector<1x2x128xf32>,
    return
  }
  func.func @transform_0(%arg0: i32) -> (i32, i32, i32, i32) {
    %c0_i32 = arith.constant 0 : i32
    %c0_i32_0 = arith.constant 0 : i32
    %c0_i32_1 = arith.constant 0 : i32
    %c0_i32_2 = arith.constant 0 : i32
    return %arg0, %c0_i32, %c0_i32_0, %c0_i32_1 : i32, i32, i32, i32
  }
  func.func @transform_1(%arg0: i32) -> (i32, i32) {
    %c0_i32 = arith.constant 0 : i32
    %c0_i32_0 = arith.constant 0 : i32
    %c0_i32_1 = arith.constant 0 : i32
    return %c0_i32, %c0_i32_0 : i32, i32
  }
  func.func @transform_2(%arg0: i32) -> (i32, i32) {
    %c0_i32 = arith.constant 0 : i32
    %c0_i32_0 = arith.constant 0 : i32
    %c0_i32_1 = arith.constant 0 : i32
    return %c0_i32, %c0_i32_0 : i32, i32
  }
  func.func @transform_3(%arg0: i32) -> (i32, i32, i32, i32) {
    %c0_i32 = arith.constant 0 : i32
    %c0_i32_0 = arith.constant 0 : i32
    %c0_i32_1 = arith.constant 0 : i32
    %c0_i32_2 = arith.constant 0 : i32
    return %arg0, %c0_i32, %c0_i32_0, %c0_i32_1 : i32, i32, i32, i32
  }
  func.func @transform_4(%arg0: i32) -> (i32, i32, i32) {
    %c0_i32 = arith.constant 0 : i32
    %c0_i32_0 = arith.constant 0 : i32
    %c0_i32_1 = arith.constant 0 : i32
    return %arg0, %c0_i32, %c0_i32_0 : i32, i32, i32
  }
}

</mosaic_0001>

<llo_original>
// kernel: tpu_custom_call.1
$region0: #{tpu_custom_call.1}
  #allocation0 [shape = 'u32[]', space=smem, size = 0x4, offset = 0x4, fixed_abs, tag = 'smem constant byte address 0x4 - core index']
  #allocation1 [shape = 'u32[144,128]{1,0:T(1,128)}', space=vmem, size = 0x12000, scoped, tag = 'internal scratch']
  #allocation2 [shape = 'f32[10,10,4]{2,1,0:T(8,128)}', space=vmem, size = 0x14000, scoped, tag = 'scratch operand']
  %s0 = inlined_call_operand.vmem [shape: f32[2,16,16,4], index: 0, kind: input, shape index: {}]
  %s1 = inlined_call_operand.vmem [shape: f32[36,128], index: 1, kind: input, shape index: {}]
  %s2 = inlined_call_operand.vmem [shape: f32[1,128], index: 2, kind: input, shape index: {}]
  %s3 = inlined_call_operand.hbm [shape: f32[2,8,8,128], index: 3, kind: output, shape index: {0}]
  %s4 = inlined_call_operand.hbm [shape: f32[2,2,128], index: 4, kind: output, shape index: {1}]
  %5 = xla_tuple %s3, %s4
  %s6 = sld [smem:[#allocation0]]
  $region53: #{tpu_custom_call.1} parent=0
    _
  %s8 = ssub.s32 1, %s6
  %s9 = scalar_select 0, %s8, %s6
  $region1: #{tpu_custom_call.1} parent=0
    #allocation3 [shape = 'u8[65536]{0}', space=vmem, size = 0x10000, scoped, tag = 'output window, operand 0']
    #allocation4 [shape = 's32[2]{0}', space=sflag, size = 0x8, scoped, tag = 'scoped memory for tpu_custom_call.1']
    #allocation5 [shape = 'u8[2048]{0}', space=vmem, size = 0x800, scoped, tag = 'output window, operand 1']
    #allocation6 [shape = 's32[2]{0}', space=sflag, size = 0x8, scoped, tag = 'scoped memory for tpu_custom_call.1']
    %10 = vsyncpa [#allocation4], 0
    %s11 = scalar_lea.sflag [#allocation4], 1
    %12 = vsyncpa %s11, 0
    %13 = vsyncpa [#allocation6], 0
    %s14 = scalar_lea.sflag [#allocation6], 1
    %15 = vsyncpa %s14, 0
    loop: start=0, step=1, limit=4
    $region2: #{tpu_custom_call.1} parent=1 // loop_pre_header
      _
    $region3: #{tpu_custom_call.1} parent=1 // loop_header
      %s17 = sphi 0, %s21
      %p18 = scmp.ge.s32.totalorder %s17, 4
      %s27 = sphi 0, %s29
      %s30 = sphi 0, %s27
      %s31 = sphi 0, %s30
      %s47 = sphi 0, %s31
      %s51 = sphi 0, %s51
      %s53 = sphi 0, %s51
      %s54 = sphi 0, %s53
      %s68 = sphi 0, %s54
      %s72 = sphi 0, %s72
      %s74 = sphi 0, %s72
      %s75 = sphi 0, %s74
      %s89 = sphi 0, %s75
      %s95 = sphi 0, %s97
      %s98 = sphi 0, %s95
      %s99 = sphi 0, %s98
      %s115 = sphi 0, %s99
      %s121 = sphi 0, %s123
      %s124 = sphi 0, %s121
      %s125 = sphi 0, %s124
      %s141 = sphi 0, %s125
    $region4: #{tpu_custom_call.1} parent=1 // loop_header_branch
      %20 = sbr.rel (%p18) target = $region8
    $region5: #{tpu_custom_call.1} parent=1 // loop_body
      %s22 = ssub.s32 %s17, 1
      %s23 = ssub.s32 %s17, 2
      %s24 = sadd.s32 %s17, 1
      %s25 = ssub.s32 %s17, %s24
      %p26 = scmp.eq.s32.totalorder %s25, 0
      %s28 = sadd.s32 %s27, 1
      %s29 = scalar_select %p26, %s27, %s28
      %p32 = pneg %p26
      %p33 = scmp.eq.s32.totalorder %s17, 1
      %p34 = por %p32, %p33
      %p35 = scmp.ne.s32.totalorder %s27, %s30
      %p36 = scmp.eq.s32.totalorder %s17, 0
      %p37 = por %p35, %p36
      %p38 = scmp.ne.s32.totalorder %s27, %s30
      %p39 = scmp.eq.s32.totalorder %s22, 1
      %p40 = por %p38, %p39
      %p41 = scmp.ne.s32.totalorder %s30, %s31
      %p42 = scmp.eq.s32.totalorder %s22, 0
      %p43 = por %p41, %p42
      %p44 = scmp.ne.s32.totalorder %s30, %s31
      %p45 = scmp.eq.s32.totalorder %s23, 1
      %p46 = por %p44, %p45
      %p48 = scmp.ne.s32.totalorder %s31, %s47
      %p49 = scmp.eq.s32.totalorder %s23, 0
      %p50 = por %p48, %p49
      %s52 = sadd.s32 %s51, 1
      %p55 = scmp.eq.s32.totalorder %s17, 1
      %p56 = scmp.ne.s32.totalorder %s51, %s53
      %p57 = scmp.eq.s32.totalorder %s17, 0
      %p58 = por %p56, %p57
      %p59 = scmp.ne.s32.totalorder %s51, %s53
      %p60 = scmp.eq.s32.totalorder %s22, 1
      %p61 = por %p59, %p60
      %p62 = scmp.ne.s32.totalorder %s53, %s54
      %p63 = scmp.eq.s32.totalorder %s22, 0
      %p64 = por %p62, %p63
      %p65 = scmp.ne.s32.totalorder %s53, %s54
      %p66 = scmp.eq.s32.totalorder %s23, 1
      %p67 = por %p65, %p66
      %p69 = scmp.ne.s32.totalorder %s54, %s68
      %p70 = scmp.eq.s32.totalorder %s23, 0
      %p71 = por %p69, %p70
      %s73 = sadd.s32 %s72, 1
      %p76 = scmp.eq.s32.totalorder %s17, 1
      %p77 = scmp.ne.s32.totalorder %s72, %s74
      %p78 = scmp.eq.s32.totalorder %s17, 0
      %p79 = por %p77, %p78
      %p80 = scmp.ne.s32.totalorder %s72, %s74
      %p81 = scmp.eq.s32.totalorder %s22, 1
      %p82 = por %p80, %p81
      %p83 = scmp.ne.s32.totalorder %s74, %s75
      %p84 = scmp.eq.s32.totalorder %s22, 0
      %p85 = por %p83, %p84
      %p86 = scmp.ne.s32.totalorder %s74, %s75
      %p87 = scmp.eq.s32.totalorder %s23, 1
      %p88 = por %p86, %p87
      %p90 = scmp.ne.s32.totalorder %s75, %s89
      %p91 = scmp.eq.s32.totalorder %s23, 0
      %p92 = por %p90, %p91
      %s93 = ssub.s32 %s17, %s24
      %p94 = scmp.eq.s32.totalorder %s93, 0
      %s96 = sadd.s32 %s95, 1
      %s97 = scalar_select %p94, %s95, %s96
      %p100 = pneg %p94
      %p101 = scmp.eq.s32.totalorder %s17, 1
      %p102 = por %p100, %p101
      %p103 = scmp.ne.s32.totalorder %s95, %s98
      %p104 = scmp.eq.s32.totalorder %s17, 0
      %p105 = por %p103, %p104
      %p106 = scmp.ne.s32.totalorder %s95, %s98
      %p107 = scmp.eq.s32.totalorder %s22, 1
      %p108 = por %p106, %p107
      %p109 = scmp.ne.s32.totalorder %s98, %s99
      %p110 = scmp.eq.s32.totalorder %s22, 0
      %p111 = por %p109, %p110
      %p112 = scmp.ne.s32.totalorder %s98, %s99
      %p113 = scmp.eq.s32.totalorder %s23, 1
      %p114 = por %p112, %p113
      %p116 = scmp.ne.s32.totalorder %s99, %s115
      %p117 = scmp.eq.s32.totalorder %s23, 0
      %p118 = por %p116, %p117
      %s119 = ssub.s32 %s17, %s24
      %p120 = scmp.eq.s32.totalorder %s119, 0
      %s122 = sadd.s32 %s121, 1
      %s123 = scalar_select %p120, %s121, %s122
      %p126 = pneg %p120
      %p127 = scmp.eq.s32.totalorder %s17, 1
      %p128 = por %p126, %p127
      %p129 = scmp.ne.s32.totalorder %s121, %s124
      %p130 = scmp.eq.s32.totalorder %s17, 0
      %p131 = por %p129, %p130
      %p132 = scmp.ne.s32.totalorder %s121, %s124
      %p133 = scmp.eq.s32.totalorder %s22, 1
      %p134 = por %p132, %p133
      %p135 = scmp.ne.s32.totalorder %s124, %s125
      %p136 = scmp.eq.s32.totalorder %s22, 0
      %p137 = por %p135, %p136
      %p138 = scmp.ne.s32.totalorder %s124, %s125
      %p139 = scmp.eq.s32.totalorder %s23, 1
      %p140 = por %p138, %p139
      %p142 = scmp.ne.s32.totalorder %s125, %s141
      %p143 = scmp.eq.s32.totalorder %s23, 0
      %p144 = por %p142, %p143
      %p145 = scmp.le.s32.totalorder 1, %s17
      %p146 = scmp.lt.s32.totalorder %s17, 3
      %p147 = pnand %p145, %p146
      %p148 = pneg %p147
      // Predicated region
      $region9: #{tpu_custom_call.1} parent=5 // pred_check
        _
      $region10: #{tpu_custom_call.1} parent=5 // pred_check_branch
        %150 = sbr.rel (%p147) target = $region12
      $region11: #{tpu_custom_call.1} parent=5 // pred_region
        %s151 = ssub.s32 %s17, 1
        // Predicated region
        $region13: #{tpu_custom_call.1} parent=11 // pred_check
          %p152 = pneg %p64
        $region14: #{tpu_custom_call.1} parent=11 // pred_check_branch
          %154 = sbr.rel (%p152) target = $region16
        $region15: #{tpu_custom_call.1} parent=11 // pred_region
          _
        $region16: #{tpu_custom_call.1} parent=11 // pred_fallthru
          _
        // Predicated region
        $region17: #{tpu_custom_call.1} parent=11 // pred_check
          %p155 = pneg %p85
        $region18: #{tpu_custom_call.1} parent=11 // pred_check_branch
          %157 = sbr.rel (%p155) target = $region20
        $region19: #{tpu_custom_call.1} parent=11 // pred_region
          _
        $region20: #{tpu_custom_call.1} parent=11 // pred_fallthru
          _
      $region12: #{tpu_custom_call.1} parent=5 // pred_fallthru
        _
      %p158 = scmp.lt.s32.totalorder %s17, 2
      // Predicated region
      $region21: #{tpu_custom_call.1} parent=5 // pred_check
        %p159 = pneg %p158
      $region22: #{tpu_custom_call.1} parent=5 // pred_check_branch
        %161 = sbr.rel (%p159) target = $region24
      $region23: #{tpu_custom_call.1} parent=5 // pred_region
        // Predicated region
        $region25: #{tpu_custom_call.1} parent=23 // pred_check
          %p162 = pneg %p37
        $region26: #{tpu_custom_call.1} parent=23 // pred_check_branch
          %164 = sbr.rel (%p162) target = $region28
        $region27: #{tpu_custom_call.1} parent=23 // pred_region
          %p165 = scmp.lt.s32.totalorder %s17, 1
          %s166 = scalar_select %p165, %s17, 1
          %s167 = smul.addr %s166, 32
          %s168 = smul.addr %s167, 8
          %s169 = scalar_lea.vmem %s0, %s168
        $region28: #{tpu_custom_call.1} parent=23 // pred_fallthru
          _
      $region24: #{tpu_custom_call.1} parent=5 // pred_fallthru
        _
      %p170 = scmp.le.s32.totalorder 1, %s17
      %p171 = scmp.lt.s32.totalorder %s17, 3
      %p172 = pnand %p170, %p171
      %p173 = pneg %p172
      // Predicated region
      $region29: #{tpu_custom_call.1} parent=5 // pred_check
        _
      $region30: #{tpu_custom_call.1} parent=5 // pred_check_branch
        %175 = sbr.rel (%p172) target = $region32
      $region31: #{tpu_custom_call.1} parent=5 // pred_region
        %s176 = ssub.s32 %s17, 1
        %p177 = scmp.lt.s32.totalorder %s22, 1
        %s178 = scalar_select %p177, %s22, 1
        %s179 = smul.addr %s178, 32
        %s180 = smul.addr %s179, 8
        %s181 = scalar_lea.vmem %s0, %s180
        %p182 = pneg %p43
        %p183 = pneg %p40
        %p184 = pneg %p64
        %p185 = pneg %p61
        %p186 = pneg %p85
        %p187 = pneg %p82
        %p188 = pneg %p111
        %p189 = pneg %p108
        %s190 = sand.u32 %s98, 1
        %s191 = scalar_lea.sflag [#allocation4], %s190
        %s192 = sand.u32 %s98, 1
        %s193 = smul.addr %s192, 64
        %s194 = scalar_lea.vmem [#allocation3], %s193
        %p195 = pneg %p137
        %p196 = pneg %p134
        %s197 = sand.u32 %s124, 1
        %s198 = scalar_lea.sflag [#allocation6], %s197
        %s199 = sand.u32 %s124, 1
        %s200 = smul.addr %s199, 2
        %s201 = scalar_lea.vmem [#allocation5], %s200
        %p202 = scmp.lt.s32.totalorder %s22, 1
        %s203 = scalar_select %p202, %s22, 1
        %s204 = smul.addr %s203, 32
        %s205 = smul.addr %s204, 8
        %s206 = scalar_lea.vmem %s0, %s205
        %v207 = vld [vmem:[%s206] sm:$0xff]
        %v208 = vld [vmem:[%s206 + $0x8] sm:$0xff]
        %v209 = vld [vmem:[%s206 + $0x10] sm:$0xff]
        %v210 = vld [vmem:[%s206 + $0x18] sm:$0xff]
        %v211 = vld [vmem:[%s206 + $0x20] sm:$0xff]
        %v212 = vld [vmem:[%s206 + $0x28] sm:$0xff]
        %v213 = vld [vmem:[%s206 + $0x30] sm:$0xff]
        %v214 = vld [vmem:[%s206 + $0x38] sm:$0xff]
        %v215 = vld [vmem:[%s206 + $0x40] sm:$0xff]
        %v216 = vld [vmem:[%s206 + $0x48] sm:$0xff]
        %v217 = vld [vmem:[%s206 + $0x50] sm:$0xff]
        %v218 = vld [vmem:[%s206 + $0x58] sm:$0xff]
        %v219 = vld [vmem:[%s206 + $0x60] sm:$0xff]
        %v220 = vld [vmem:[%s206 + $0x68] sm:$0xff]
        %v221 = vld [vmem:[%s206 + $0x70] sm:$0xff]
        %v222 = vld [vmem:[%s206 + $0x78] sm:$0xff]
        %v223 = vld [vmem:[%s206 + $0x80] sm:$0xff]
        %v224 = vld [vmem:[%s206 + $0x88] sm:$0xff]
        %v225 = vld [vmem:[%s206 + $0x90] sm:$0xff]
        %v226 = vld [vmem:[%s206 + $0x98] sm:$0xff]
        %v227 = vld [vmem:[%s206 + $0xa0] sm:$0xff]
        %v228 = vld [vmem:[%s206 + $0xa8] sm:$0xff]
        %v229 = vld [vmem:[%s206 + $0xb0] sm:$0xff]
        %v230 = vld [vmem:[%s206 + $0xb8] sm:$0xff]
        %v231 = vld [vmem:[%s206 + $0xc0] sm:$0xff]
        %v232 = vld [vmem:[%s206 + $0xc8] sm:$0xff]
        %v233 = vld [vmem:[%s206 + $0xd0] sm:$0xff]
        %v234 = vld [vmem:[%s206 + $0xd8] sm:$0xff]
        %v235 = vld [vmem:[%s206 + $0xe0] sm:$0xff]
        %v236 = vld [vmem:[%s206 + $0xe8] sm:$0xff]
        %v237 = vld [vmem:[%s206 + $0xf0] sm:$0xff]
        %v238 = vld [vmem:[%s206 + $0xf8] sm:$0xff]
        %v239 = vmax.f32 %v207, %v209
        %v240 = vmax.f32 %v208, %v210
        %v241 = vmax.f32 %v211, %v213
        %v242 = vmax.f32 %v212, %v214
        %v243 = vmax.f32 %v215, %v217
        %v244 = vmax.f32 %v216, %v218
        %v245 = vmax.f32 %v219, %v221
        %v246 = vmax.f32 %v220, %v222
        %v247 = vmax.f32 %v223, %v225
        %v248 = vmax.f32 %v224, %v226
        %v249 = vmax.f32 %v227, %v229
        %v250 = vmax.f32 %v228, %v230
        %v251 = vmax.f32 %v231, %v233
        %v252 = vmax.f32 %v232, %v234
        %v253 = vmax.f32 %v235, %v237
        %v254 = vmax.f32 %v236, %v238
        %v271 = vcombine.high %v239, %v239
        %v273 = vunpack.c.l.s4 1983009808
        %v274 = vunpack.c.0.s8 %v273
        %v275 = vlaneseq
        %v276 = vshrl.u32 %v275, 7
        %v277 = vsub.s32 %v274, %v276
        %v278 = vrot.slane %v239, %v277
        %v280 = vunpack.c.l.s4 1983009808
        %v281 = vunpack.c.0.s8 %v280
        %v282 = vlaneseq
        %v283 = vshrl.u32 %v282, 7
        %v284 = vsub.s32 %v281, %v283
        %v285 = vrot.slane %v271, %v284
        %v286 = vcombine.high %v278, %v278
        %v287 = vcombine.high %v285, %v285
        %v288 = vcombine.high %v240, %v240
        %v290 = vunpack.c.l.s4 1983009808
        %v291 = vunpack.c.0.s8 %v290
        %v292 = vlaneseq
        %v293 = vshrl.u32 %v292, 7
        %v294 = vsub.s32 %v291, %v293
        %v295 = vrot.slane %v240, %v294
        %v297 = vunpack.c.l.s4 1983009808
        %v298 = vunpack.c.0.s8 %v297
        %v299 = vlaneseq
        %v300 = vshrl.u32 %v299, 7
        %v301 = vsub.s32 %v298, %v300
        %v302 = vrot.slane %v288, %v301
        %v303 = vcombine.high %v295, %v295
        %v304 = vcombine.high %v302, %v302
        %v305 = vcombine.high %v241, %v241
        %v307 = vunpack.c.l.s4 1983009808
        %v308 = vunpack.c.0.s8 %v307
        %v309 = vlaneseq
        %v310 = vshrl.u32 %v309, 7
        %v311 = vsub.s32 %v308, %v310
        %v312 = vrot.slane %v241, %v311
        %v314 = vunpack.c.l.s4 1983009808
        %v315 = vunpack.c.0.s8 %v314
        %v316 = vlaneseq
        %v317 = vshrl.u32 %v316, 7
        %v318 = vsub.s32 %v315, %v317
        %v319 = vrot.slane %v305, %v318
        %v320 = vcombine.high %v312, %v312
        %v321 = vcombine.high %v319, %v319
        %v322 = vcombine.high %v242, %v242
        %v324 = vunpack.c.l.s4 1983009808
        %v325 = vunpack.c.0.s8 %v324
        %v326 = vlaneseq
        %v327 = vshrl.u32 %v326, 7
        %v328 = vsub.s32 %v325, %v327
        %v329 = vrot.slane %v242, %v328
        %v331 = vunpack.c.l.s4 1983009808
        %v332 = vunpack.c.0.s8 %v331
        %v333 = vlaneseq
        %v334 = vshrl.u32 %v333, 7
        %v335 = vsub.s32 %v332, %v334
        %v336 = vrot.slane %v322, %v335
        %v337 = vcombine.high %v329, %v329
        %v338 = vcombine.high %v336, %v336
        %v339 = vcombine.high %v243, %v243
        %v341 = vunpack.c.l.s4 1983009808
        %v342 = vunpack.c.0.s8 %v341
        %v343 = vlaneseq
        %v344 = vshrl.u32 %v343, 7
        %v345 = vsub.s32 %v342, %v344
        %v346 = vrot.slane %v243, %v345
        %v348 = vunpack.c.l.s4 1983009808
        %v349 = vunpack.c.0.s8 %v348
        %v350 = vlaneseq
        %v351 = vshrl.u32 %v350, 7
        %v352 = vsub.s32 %v349, %v351
        %v353 = vrot.slane %v339, %v352
        %v354 = vcombine.high %v346, %v346
        %v355 = vcombine.high %v353, %v353
        %v356 = vcombine.high %v244, %v244
        %v358 = vunpack.c.l.s4 1983009808
        %v359 = vunpack.c.0.s8 %v358
        %v360 = vlaneseq
        %v361 = vshrl.u32 %v360, 7
        %v362 = vsub.s32 %v359, %v361
        %v363 = vrot.slane %v244, %v362
        %v365 = vunpack.c.l.s4 1983009808
        %v366 = vunpack.c.0.s8 %v365
        %v367 = vlaneseq
        %v368 = vshrl.u32 %v367, 7
        %v369 = vsub.s32 %v366, %v368
        %v370 = vrot.slane %v356, %v369
        %v371 = vcombine.high %v363, %v363
        %v372 = vcombine.high %v370, %v370
        %v373 = vcombine.high %v245, %v245
        %v375 = vunpack.c.l.s4 1983009808
        %v376 = vunpack.c.0.s8 %v375
        %v377 = vlaneseq
        %v378 = vshrl.u32 %v377, 7
        %v379 = vsub.s32 %v376, %v378
        %v380 = vrot.slane %v245, %v379
        %v382 = vunpack.c.l.s4 1983009808
        %v383 = vunpack.c.0.s8 %v382
        %v384 = vlaneseq
        %v385 = vshrl.u32 %v384, 7
        %v386 = vsub.s32 %v383, %v385
        %v387 = vrot.slane %v373, %v386
        %v388 = vcombine.high %v380, %v380
        %v389 = vcombine.high %v387, %v387
        %v390 = vcombine.high %v246, %v246
        %v392 = vunpack.c.l.s4 1983009808
        %v393 = vunpack.c.0.s8 %v392
        %v394 = vlaneseq
        %v395 = vshrl.u32 %v394, 7
        %v396 = vsub.s32 %v393, %v395
        %v397 = vrot.slane %v246, %v396
        %v399 = vunpack.c.l.s4 1983009808
        %v400 = vunpack.c.0.s8 %v399
        %v401 = vlaneseq
        %v402 = vshrl.u32 %v401, 7
        %v403 = vsub.s32 %v400, %v402
        %v404 = vrot.slane %v390, %v403
        %v405 = vcombine.high %v397, %v397
        %v406 = vcombine.high %v404, %v404
        %v407 = vcombine.high %v247, %v247
        %v409 = vunpack.c.l.s4 1983009808
        %v410 = vunpack.c.0.s8 %v409
        %v411 = vlaneseq
        %v412 = vshrl.u32 %v411, 7
        %v413 = vsub.s32 %v410, %v412
        %v414 = vrot.slane %v247, %v413
        %v416 = vunpack.c.l.s4 1983009808
        %v417 = vunpack.c.0.s8 %v416
        %v418 = vlaneseq
        %v419 = vshrl.u32 %v418, 7
        %v420 = vsub.s32 %v417, %v419
        %v421 = vrot.slane %v407, %v420
        %v422 = vcombine.high %v414, %v414
        %v423 = vcombine.high %v421, %v421
        %v424 = vcombine.high %v248, %v248
        %v426 = vunpack.c.l.s4 1983009808
        %v427 = vunpack.c.0.s8 %v426
        %v428 = vlaneseq
        %v429 = vshrl.u32 %v428, 7
        %v430 = vsub.s32 %v427, %v429
        %v431 = vrot.slane %v248, %v430
        %v433 = vunpack.c.l.s4 1983009808
        %v434 = vunpack.c.0.s8 %v433
        %v435 = vlaneseq
        %v436 = vshrl.u32 %v435, 7
        %v437 = vsub.s32 %v434, %v436
        %v438 = vrot.slane %v424, %v437
        %v439 = vcombine.high %v431, %v431
        %v440 = vcombine.high %v438, %v438
        %v441 = vcombine.high %v249, %v249
        %v443 = vunpack.c.l.s4 1983009808
        %v444 = vunpack.c.0.s8 %v443
        %v445 = vlaneseq
        %v446 = vshrl.u32 %v445, 7
        %v447 = vsub.s32 %v444, %v446
        %v448 = vrot.slane %v249, %v447
        %v450 = vunpack.c.l.s4 1983009808
        %v451 = vunpack.c.0.s8 %v450
        %v452 = vlaneseq
        %v453 = vshrl.u32 %v452, 7
        %v454 = vsub.s32 %v451, %v453
        %v455 = vrot.slane %v441, %v454
        %v456 = vcombine.high %v448, %v448
        %v457 = vcombine.high %v455, %v455
        %v458 = vcombine.high %v250, %v250
        %v460 = vunpack.c.l.s4 1983009808
        %v461 = vunpack.c.0.s8 %v460
        %v462 = vlaneseq
        %v463 = vshrl.u32 %v462, 7
        %v464 = vsub.s32 %v461, %v463
        %v465 = vrot.slane %v250, %v464
        %v467 = vunpack.c.l.s4 1983009808
        %v468 = vunpack.c.0.s8 %v467
        %v469 = vlaneseq
        %v470 = vshrl.u32 %v469, 7
        %v471 = vsub.s32 %v468, %v470
        %v472 = vrot.slane %v458, %v471
        %v473 = vcombine.high %v465, %v465
        %v474 = vcombine.high %v472, %v472
        %v475 = vcombine.high %v251, %v251
        %v477 = vunpack.c.l.s4 1983009808
        %v478 = vunpack.c.0.s8 %v477
        %v479 = vlaneseq
        %v480 = vshrl.u32 %v479, 7
        %v481 = vsub.s32 %v478, %v480
        %v482 = vrot.slane %v251, %v481
        %v484 = vunpack.c.l.s4 1983009808
        %v485 = vunpack.c.0.s8 %v484
        %v486 = vlaneseq
        %v487 = vshrl.u32 %v486, 7
        %v488 = vsub.s32 %v485, %v487
        %v489 = vrot.slane %v475, %v488
        %v490 = vcombine.high %v482, %v482
        %v491 = vcombine.high %v489, %v489
        %v492 = vcombine.high %v252, %v252
        %v494 = vunpack.c.l.s4 1983009808
        %v495 = vunpack.c.0.s8 %v494
        %v496 = vlaneseq
        %v497 = vshrl.u32 %v496, 7
        %v498 = vsub.s32 %v495, %v497
        %v499 = vrot.slane %v252, %v498
        %v501 = vunpack.c.l.s4 1983009808
        %v502 = vunpack.c.0.s8 %v501
        %v503 = vlaneseq
        %v504 = vshrl.u32 %v503, 7
        %v505 = vsub.s32 %v502, %v504
        %v506 = vrot.slane %v492, %v505
        %v507 = vcombine.high %v499, %v499
        %v508 = vcombine.high %v506, %v506
        %v509 = vcombine.high %v253, %v253
        %v511 = vunpack.c.l.s4 1983009808
        %v512 = vunpack.c.0.s8 %v511
        %v513 = vlaneseq
        %v514 = vshrl.u32 %v513, 7
        %v515 = vsub.s32 %v512, %v514
        %v516 = vrot.slane %v253, %v515
        %v518 = vunpack.c.l.s4 1983009808
        %v519 = vunpack.c.0.s8 %v518
        %v520 = vlaneseq
        %v521 = vshrl.u32 %v520, 7
        %v522 = vsub.s32 %v519, %v521
        %v523 = vrot.slane %v509, %v522
        %v524 = vcombine.high %v516, %v516
        %v525 = vcombine.high %v523, %v523
        %v526 = vcombine.high %v254, %v254
        %v528 = vunpack.c.l.s4 1983009808
        %v529 = vunpack.c.0.s8 %v528
        %v530 = vlaneseq
        %v531 = vshrl.u32 %v530, 7
        %v532 = vsub.s32 %v529, %v531
        %v533 = vrot.slane %v254, %v532
        %v535 = vunpack.c.l.s4 1983009808
        %v536 = vunpack.c.0.s8 %v535
        %v537 = vlaneseq
        %v538 = vshrl.u32 %v537, 7
        %v539 = vsub.s32 %v536, %v538
        %v540 = vrot.slane %v526, %v539
        %v541 = vcombine.high %v533, %v533
        %v542 = vcombine.high %v540, %v540
        %v607 = vrot.slane %v278, 7
        %v608 = vrot.slane %v607, 2
        %v609 = vrot.slane %v286, 7
        %v610 = vrot.slane %v609, 2
        %v611 = vrot.slane %v285, 7
        %v612 = vrot.slane %v611, 2
        %v613 = vrot.slane %v287, 7
        %v614 = vrot.slane %v613, 2
        %v615 = vrot.slane %v295, 7
        %v616 = vrot.slane %v615, 2
        %v617 = vrot.slane %v303, 7
        %v618 = vrot.slane %v617, 2
        %v619 = vrot.slane %v302, 7
        %v620 = vrot.slane %v619, 2
        %v621 = vrot.slane %v304, 7
        %v622 = vrot.slane %v621, 2
        %v623 = vrot.slane %v312, 7
        %v624 = vrot.slane %v623, 2
        %v625 = vrot.slane %v320, 7
        %v626 = vrot.slane %v625, 2
        %v627 = vrot.slane %v319, 7
        %v628 = vrot.slane %v627, 2
        %v629 = vrot.slane %v321, 7
        %v630 = vrot.slane %v629, 2
        %v631 = vrot.slane %v329, 7
        %v632 = vrot.slane %v631, 2
        %v633 = vrot.slane %v337, 7
        %v634 = vrot.slane %v633, 2
        %v635 = vrot.slane %v336, 7
        %v636 = vrot.slane %v635, 2
        %v637 = vrot.slane %v338, 7
        %v638 = vrot.slane %v637, 2
        %v639 = vrot.slane %v346, 7
        %v640 = vrot.slane %v639, 2
        %v641 = vrot.slane %v354, 7
        %v642 = vrot.slane %v641, 2
        %v643 = vrot.slane %v353, 7
        %v644 = vrot.slane %v643, 2
        %v645 = vrot.slane %v355, 7
        %v646 = vrot.slane %v645, 2
        %v647 = vrot.slane %v363, 7
        %v648 = vrot.slane %v647, 2
        %v649 = vrot.slane %v371, 7
        %v650 = vrot.slane %v649, 2
        %v651 = vrot.slane %v370, 7
        %v652 = vrot.slane %v651, 2
        %v653 = vrot.slane %v372, 7
        %v654 = vrot.slane %v653, 2
        %v655 = vrot.slane %v380, 7
        %v656 = vrot.slane %v655, 2
        %v657 = vrot.slane %v388, 7
        %v658 = vrot.slane %v657, 2
        %v659 = vrot.slane %v387, 7
        %v660 = vrot.slane %v659, 2
        %v661 = vrot.slane %v389, 7
        %v662 = vrot.slane %v661, 2
        %v663 = vrot.slane %v397, 7
        %v664 = vrot.slane %v663, 2
        %v665 = vrot.slane %v405, 7
        %v666 = vrot.slane %v665, 2
        %v667 = vrot.slane %v404, 7
        %v668 = vrot.slane %v667, 2
        %v669 = vrot.slane %v406, 7
        %v670 = vrot.slane %v669, 2
        %v671 = vrot.slane %v414, 7
        %v672 = vrot.slane %v671, 2
        %v673 = vrot.slane %v422, 7
        %v674 = vrot.slane %v673, 2
        %v675 = vrot.slane %v421, 7
        %v676 = vrot.slane %v675, 2
        %v677 = vrot.slane %v423, 7
        %v678 = vrot.slane %v677, 2
        %v679 = vrot.slane %v431, 7
        %v680 = vrot.slane %v679, 2
        %v681 = vrot.slane %v439, 7
        %v682 = vrot.slane %v681, 2
        %v683 = vrot.slane %v438, 7
        %v684 = vrot.slane %v683, 2
        %v685 = vrot.slane %v440, 7
        %v686 = vrot.slane %v685, 2
        %v687 = vrot.slane %v448, 7
        %v688 = vrot.slane %v687, 2
        %v689 = vrot.slane %v456, 7
        %v690 = vrot.slane %v689, 2
        %v691 = vrot.slane %v455, 7
        %v692 = vrot.slane %v691, 2
        %v693 = vrot.slane %v457, 7
        %v694 = vrot.slane %v693, 2
        %v695 = vrot.slane %v465, 7
        %v696 = vrot.slane %v695, 2
        %v697 = vrot.slane %v473, 7
        %v698 = vrot.slane %v697, 2
        %v699 = vrot.slane %v472, 7
        %v700 = vrot.slane %v699, 2
        %v701 = vrot.slane %v474, 7
        %v702 = vrot.slane %v701, 2
        %v703 = vrot.slane %v482, 7
        %v704 = vrot.slane %v703, 2
        %v705 = vrot.slane %v490, 7
        %v706 = vrot.slane %v705, 2
        %v707 = vrot.slane %v489, 7
        %v708 = vrot.slane %v707, 2
        %v709 = vrot.slane %v491, 7
        %v710 = vrot.slane %v709, 2
        %v711 = vrot.slane %v499, 7
        %v712 = vrot.slane %v711, 2
        %v713 = vrot.slane %v507, 7
        %v714 = vrot.slane %v713, 2
        %v715 = vrot.slane %v506, 7
        %v716 = vrot.slane %v715, 2
        %v717 = vrot.slane %v508, 7
        %v718 = vrot.slane %v717, 2
        %v719 = vrot.slane %v516, 7
        %v720 = vrot.slane %v719, 2
        %v721 = vrot.slane %v524, 7
        %v722 = vrot.slane %v721, 2
        %v723 = vrot.slane %v523, 7
        %v724 = vrot.slane %v723, 2
        %v725 = vrot.slane %v525, 7
        %v726 = vrot.slane %v725, 2
        %v727 = vrot.slane %v533, 7
        %v728 = vrot.slane %v727, 2
        %v729 = vrot.slane %v541, 7
        %v730 = vrot.slane %v729, 2
        %v731 = vrot.slane %v540, 7
        %v732 = vrot.slane %v731, 2
        %v733 = vrot.slane %v542, 7
        %v734 = vrot.slane %v733, 2
        %v799 = vmax.f32 %v278, %v608
        %v800 = vmax.f32 %v286, %v610
        %v801 = vmax.f32 %v285, %v612
        %v802 = vmax.f32 %v287, %v614
        %v803 = vmax.f32 %v295, %v616
        %v804 = vmax.f32 %v303, %v618
        %v805 = vmax.f32 %v302, %v620
        %v806 = vmax.f32 %v304, %v622
        %v807 = vmax.f32 %v312, %v624
        %v808 = vmax.f32 %v320, %v626
        %v809 = vmax.f32 %v319, %v628
        %v810 = vmax.f32 %v321, %v630
        %v811 = vmax.f32 %v329, %v632
        %v812 = vmax.f32 %v337, %v634
        %v813 = vmax.f32 %v336, %v636
        %v814 = vmax.f32 %v338, %v638
        %v815 = vmax.f32 %v346, %v640
        %v816 = vmax.f32 %v354, %v642
        %v817 = vmax.f32 %v353, %v644
        %v818 = vmax.f32 %v355, %v646
        %v819 = vmax.f32 %v363, %v648
        %v820 = vmax.f32 %v371, %v650
        %v821 = vmax.f32 %v370, %v652
        %v822 = vmax.f32 %v372, %v654
        %v823 = vmax.f32 %v380, %v656
        %v824 = vmax.f32 %v388, %v658
        %v825 = vmax.f32 %v387, %v660
        %v826 = vmax.f32 %v389, %v662
        %v827 = vmax.f32 %v397, %v664
        %v828 = vmax.f32 %v405, %v666
        %v829 = vmax.f32 %v404, %v668
        %v830 = vmax.f32 %v406, %v670
        %v831 = vmax.f32 %v414, %v672
        %v832 = vmax.f32 %v422, %v674
        %v833 = vmax.f32 %v421, %v676
        %v834 = vmax.f32 %v423, %v678
        %v835 = vmax.f32 %v431, %v680
        %v836 = vmax.f32 %v439, %v682
        %v837 = vmax.f32 %v438, %v684
        %v838 = vmax.f32 %v440, %v686
        %v839 = vmax.f32 %v448, %v688
        %v840 = vmax.f32 %v456, %v690
        %v841 = vmax.f32 %v455, %v692
        %v842 = vmax.f32 %v457, %v694
        %v843 = vmax.f32 %v465, %v696
        %v844 = vmax.f32 %v473, %v698
        %v845 = vmax.f32 %v472, %v700
        %v846 = vmax.f32 %v474, %v702
        %v847 = vmax.f32 %v482, %v704
        %v848 = vmax.f32 %v490, %v706
        %v849 = vmax.f32 %v489, %v708
        %v850 = vmax.f32 %v491, %v710
        %v851 = vmax.f32 %v499, %v712
        %v852 = vmax.f32 %v507, %v714
        %v853 = vmax.f32 %v506, %v716
        %v854 = vmax.f32 %v508, %v718
        %v855 = vmax.f32 %v516, %v720
        %v856 = vmax.f32 %v524, %v722
        %v857 = vmax.f32 %v523, %v724
        %v858 = vmax.f32 %v525, %v726
        %v859 = vmax.f32 %v533, %v728
        %v860 = vmax.f32 %v541, %v730
        %v861 = vmax.f32 %v540, %v732
        %v862 = vmax.f32 %v542, %v734
        %vm863 = vcmask 31744
        %864 = vst.msk [vmem:[#allocation2] sm:$0xff] %vm863, 0.0
        %vm865 = vcmask 25600
        %866 = vst.msk [vmem:[#allocation2 + $0x8] sm:$0x3] %vm865, 0.0
        %s867 = scalar_lea.vmem [#allocation2], 144
        %868 = vst.msk [vmem:[%s867] sm:$0xff] %vm863, 0.0
        %869 = vst.msk [vmem:[%s867 + $0x8] sm:$0x3] %vm865, 0.0
        %s870 = scalar_lea.vmem [#allocation2], 16
        %vm871 = vcmask 24576
        %872 = vst.msk [vmem:[%s870] sm:$0x1] %vm871, 0.0
        %873 = vst.msk [vmem:[%s870 + $0x10] sm:$0x1] %vm871, 0.0
        %874 = vst.msk [vmem:[%s870 + $0x20] sm:$0x1] %vm871, 0.0
        %875 = vst.msk [vmem:[%s870 + $0x30] sm:$0x1] %vm871, 0.0
        %876 = vst.msk [vmem:[%s870 + $0x40] sm:$0x1] %vm871, 0.0
        %877 = vst.msk [vmem:[%s870 + $0x50] sm:$0x1] %vm871, 0.0
        %878 = vst.msk [vmem:[%s870 + $0x60] sm:$0x1] %vm871, 0.0
        %879 = vst.msk [vmem:[%s870 + $0x70] sm:$0x1] %vm871, 0.0
        %880 = vst.msk [vmem:[%s870 + $0x9] sm:$0x1] %vm871, 0.0
        %881 = vst.msk [vmem:[%s870 + $0x19] sm:$0x1] %vm871, 0.0
        %882 = vst.msk [vmem:[%s870 + $0x29] sm:$0x1] %vm871, 0.0
        %883 = vst.msk [vmem:[%s870 + $0x39] sm:$0x1] %vm871, 0.0
        %884 = vst.msk [vmem:[%s870 + $0x49] sm:$0x1] %vm871, 0.0
        %885 = vst.msk [vmem:[%s870 + $0x59] sm:$0x1] %vm871, 0.0
        %886 = vst.msk [vmem:[%s870 + $0x69] sm:$0x1] %vm871, 0.0
        %887 = vst.msk [vmem:[%s870 + $0x79] sm:$0x1] %vm871, 0.0
        %v952 = vlaneseq
        %v953 = vshrl.u32 %v952, 7
        %v954 = vsub.s32 0, %v953
        %v955 = vrot.slane %v799, %v954
        %v956 = vlaneseq
        %v957 = vshrl.u32 %v956, 7
        %v958 = vsub.s32 0, %v957
        %v959 = vrot.slane %v800, %v958
        %v960 = vlaneseq
        %v961 = vshrl.u32 %v960, 7
        %v962 = vsub.s32 0, %v961
        %v963 = vrot.slane %v801, %v962
        %v964 = vlaneseq
        %v965 = vshrl.u32 %v964, 7
        %v966 = vsub.s32 0, %v965
        %v967 = vrot.slane %v802, %v966
        %v968 = vlaneseq
        %v969 = vshrl.u32 %v968, 7
        %v970 = vsub.s32 0, %v969
        %v971 = vrot.slane %v803, %v970
        %v972 = vlaneseq
        %v973 = vshrl.u32 %v972, 7
        %v974 = vsub.s32 0, %v973
        %v975 = vrot.slane %v804, %v974
        %v976 = vlaneseq
        %v977 = vshrl.u32 %v976, 7
        %v978 = vsub.s32 0, %v977
        %v979 = vrot.slane %v805, %v978
        %v980 = vlaneseq
        %v981 = vshrl.u32 %v980, 7
        %v982 = vsub.s32 0, %v981
        %v983 = vrot.slane %v806, %v982
        %v984 = vlaneseq
        %v985 = vshrl.u32 %v984, 7
        %v986 = vsub.s32 0, %v985
        %v987 = vrot.slane %v807, %v986
        %v988 = vlaneseq
        %v989 = vshrl.u32 %v988, 7
        %v990 = vsub.s32 0, %v989
        %v991 = vrot.slane %v808, %v990
        %v992 = vlaneseq
        %v993 = vshrl.u32 %v992, 7
        %v994 = vsub.s32 0, %v993
        %v995 = vrot.slane %v809, %v994
        %v996 = vlaneseq
        %v997 = vshrl.u32 %v996, 7
        %v998 = vsub.s32 0, %v997
        %v999 = vrot.slane %v810, %v998
        %v1000 = vlaneseq
        %v1001 = vshrl.u32 %v1000, 7
        %v1002 = vsub.s32 0, %v1001
        %v1003 = vrot.slane %v811, %v1002
        %v1004 = vlaneseq
        %v1005 = vshrl.u32 %v1004, 7
        %v1006 = vsub.s32 0, %v1005
        %v1007 = vrot.slane %v812, %v1006
        %v1008 = vlaneseq
        %v1009 = vshrl.u32 %v1008, 7
        %v1010 = vsub.s32 0, %v1009
        %v1011 = vrot.slane %v813, %v1010
        %v1012 = vlaneseq
        %v1013 = vshrl.u32 %v1012, 7
        %v1014 = vsub.s32 0, %v1013
        %v1015 = vrot.slane %v814, %v1014
        %v1016 = vlaneseq
        %v1017 = vshrl.u32 %v1016, 7
        %v1018 = vsub.s32 0, %v1017
        %v1019 = vrot.slane %v815, %v1018
        %v1020 = vlaneseq
        %v1021 = vshrl.u32 %v1020, 7
        %v1022 = vsub.s32 0, %v1021
        %v1023 = vrot.slane %v816, %v1022
        %v1024 = vlaneseq
        %v1025 = vshrl.u32 %v1024, 7
        %v1026 = vsub.s32 0, %v1025
        %v1027 = vrot.slane %v817, %v1026
        %v1028 = vlaneseq
        %v1029 = vshrl.u32 %v1028, 7
        %v1030 = vsub.s32 0, %v1029
        %v1031 = vrot.slane %v818, %v1030
        %v1032 = vlaneseq
        %v1033 = vshrl.u32 %v1032, 7
        %v1034 = vsub.s32 0, %v1033
        %v1035 = vrot.slane %v819, %v1034
        %v1036 = vlaneseq
        %v1037 = vshrl.u32 %v1036, 7
        %v1038 = vsub.s32 0, %v1037
        %v1039 = vrot.slane %v820, %v1038
        %v1040 = vlaneseq
        %v1041 = vshrl.u32 %v1040, 7
        %v1042 = vsub.s32 0, %v1041
        %v1043 = vrot.slane %v821, %v1042
        %v1044 = vlaneseq
        %v1045 = vshrl.u32 %v1044, 7
        %v1046 = vsub.s32 0, %v1045
        %v1047 = vrot.slane %v822, %v1046
        %v1048 = vlaneseq
        %v1049 = vshrl.u32 %v1048, 7
        %v1050 = vsub.s32 0, %v1049
        %v1051 = vrot.slane %v823, %v1050
        %v1052 = vlaneseq
        %v1053 = vshrl.u32 %v1052, 7
        %v1054 = vsub.s32 0, %v1053
        %v1055 = vrot.slane %v824, %v1054
        %v1056 = vlaneseq
        %v1057 = vshrl.u32 %v1056, 7
        %v1058 = vsub.s32 0, %v1057
        %v1059 = vrot.slane %v825, %v1058
        %v1060 = vlaneseq
        %v1061 = vshrl.u32 %v1060, 7
        %v1062 = vsub.s32 0, %v1061
        %v1063 = vrot.slane %v826, %v1062
        %v1064 = vlaneseq
        %v1065 = vshrl.u32 %v1064, 7
        %v1066 = vsub.s32 0, %v1065
        %v1067 = vrot.slane %v827, %v1066
        %v1068 = vlaneseq
        %v1069 = vshrl.u32 %v1068, 7
        %v1070 = vsub.s32 0, %v1069
        %v1071 = vrot.slane %v828, %v1070
        %v1072 = vlaneseq
        %v1073 = vshrl.u32 %v1072, 7
        %v1074 = vsub.s32 0, %v1073
        %v1075 = vrot.slane %v829, %v1074
        %v1076 = vlaneseq
        %v1077 = vshrl.u32 %v1076, 7
        %v1078 = vsub.s32 0, %v1077
        %v1079 = vrot.slane %v830, %v1078
        %v1080 = vlaneseq
        %v1081 = vshrl.u32 %v1080, 7
        %v1082 = vsub.s32 0, %v1081
        %v1083 = vrot.slane %v831, %v1082
        %v1084 = vlaneseq
        %v1085 = vshrl.u32 %v1084, 7
        %v1086 = vsub.s32 0, %v1085
        %v1087 = vrot.slane %v832, %v1086
        %v1088 = vlaneseq
        %v1089 = vshrl.u32 %v1088, 7
        %v1090 = vsub.s32 0, %v1089
        %v1091 = vrot.slane %v833, %v1090
        %v1092 = vlaneseq
        %v1093 = vshrl.u32 %v1092, 7
        %v1094 = vsub.s32 0, %v1093
        %v1095 = vrot.slane %v834, %v1094
        %v1096 = vlaneseq
        %v1097 = vshrl.u32 %v1096, 7
        %v1098 = vsub.s32 0, %v1097
        %v1099 = vrot.slane %v835, %v1098
        %v1100 = vlaneseq
        %v1101 = vshrl.u32 %v1100, 7
        %v1102 = vsub.s32 0, %v1101
        %v1103 = vrot.slane %v836, %v1102
        %v1104 = vlaneseq
        %v1105 = vshrl.u32 %v1104, 7
        %v1106 = vsub.s32 0, %v1105
        %v1107 = vrot.slane %v837, %v1106
        %v1108 = vlaneseq
        %v1109 = vshrl.u32 %v1108, 7
        %v1110 = vsub.s32 0, %v1109
        %v1111 = vrot.slane %v838, %v1110
        %v1112 = vlaneseq
        %v1113 = vshrl.u32 %v1112, 7
        %v1114 = vsub.s32 0, %v1113
        %v1115 = vrot.slane %v839, %v1114
        %v1116 = vlaneseq
        %v1117 = vshrl.u32 %v1116, 7
        %v1118 = vsub.s32 0, %v1117
        %v1119 = vrot.slane %v840, %v1118
        %v1120 = vlaneseq
        %v1121 = vshrl.u32 %v1120, 7
        %v1122 = vsub.s32 0, %v1121
        %v1123 = vrot.slane %v841, %v1122
        %v1124 = vlaneseq
        %v1125 = vshrl.u32 %v1124, 7
        %v1126 = vsub.s32 0, %v1125
        %v1127 = vrot.slane %v842, %v1126
        %v1128 = vlaneseq
        %v1129 = vshrl.u32 %v1128, 7
        %v1130 = vsub.s32 0, %v1129
        %v1131 = vrot.slane %v843, %v1130
        %v1132 = vlaneseq
        %v1133 = vshrl.u32 %v1132, 7
        %v1134 = vsub.s32 0, %v1133
        %v1135 = vrot.slane %v844, %v1134
        %v1136 = vlaneseq
        %v1137 = vshrl.u32 %v1136, 7
        %v1138 = vsub.s32 0, %v1137
        %v1139 = vrot.slane %v845, %v1138
        %v1140 = vlaneseq
        %v1141 = vshrl.u32 %v1140, 7
        %v1142 = vsub.s32 0, %v1141
        %v1143 = vrot.slane %v846, %v1142
        %v1144 = vlaneseq
        %v1145 = vshrl.u32 %v1144, 7
        %v1146 = vsub.s32 0, %v1145
        %v1147 = vrot.slane %v847, %v1146
        %v1148 = vlaneseq
        %v1149 = vshrl.u32 %v1148, 7
        %v1150 = vsub.s32 0, %v1149
        %v1151 = vrot.slane %v848, %v1150
        %v1152 = vlaneseq
        %v1153 = vshrl.u32 %v1152, 7
        %v1154 = vsub.s32 0, %v1153
        %v1155 = vrot.slane %v849, %v1154
        %v1156 = vlaneseq
        %v1157 = vshrl.u32 %v1156, 7
        %v1158 = vsub.s32 0, %v1157
        %v1159 = vrot.slane %v850, %v1158
        %v1160 = vlaneseq
        %v1161 = vshrl.u32 %v1160, 7
        %v1162 = vsub.s32 0, %v1161
        %v1163 = vrot.slane %v851, %v1162
        %v1164 = vlaneseq
        %v1165 = vshrl.u32 %v1164, 7
        %v1166 = vsub.s32 0, %v1165
        %v1167 = vrot.slane %v852, %v1166
        %v1168 = vlaneseq
        %v1169 = vshrl.u32 %v1168, 7
        %v1170 = vsub.s32 0, %v1169
        %v1171 = vrot.slane %v853, %v1170
        %v1172 = vlaneseq
        %v1173 = vshrl.u32 %v1172, 7
        %v1174 = vsub.s32 0, %v1173
        %v1175 = vrot.slane %v854, %v1174
        %v1176 = vlaneseq
        %v1177 = vshrl.u32 %v1176, 7
        %v1178 = vsub.s32 0, %v1177
        %v1179 = vrot.slane %v855, %v1178
        %v1180 = vlaneseq
        %v1181 = vshrl.u32 %v1180, 7
        %v1182 = vsub.s32 0, %v1181
        %v1183 = vrot.slane %v856, %v1182
        %v1184 = vlaneseq
        %v1185 = vshrl.u32 %v1184, 7
        %v1186 = vsub.s32 0, %v1185
        %v1187 = vrot.slane %v857, %v1186
        %v1188 = vlaneseq
        %v1189 = vshrl.u32 %v1188, 7
        %v1190 = vsub.s32 0, %v1189
        %v1191 = vrot.slane %v858, %v1190
        %v1192 = vlaneseq
        %v1193 = vshrl.u32 %v1192, 7
        %v1194 = vsub.s32 0, %v1193
        %v1195 = vrot.slane %v859, %v1194
        %v1196 = vlaneseq
        %v1197 = vshrl.u32 %v1196, 7
        %v1198 = vsub.s32 0, %v1197
        %v1199 = vrot.slane %v860, %v1198
        %v1200 = vlaneseq
        %v1201 = vshrl.u32 %v1200, 7
        %v1202 = vsub.s32 0, %v1201
        %v1203 = vrot.slane %v861, %v1202
        %v1204 = vlaneseq
        %v1205 = vshrl.u32 %v1204, 7
        %v1206 = vsub.s32 0, %v1205
        %v1207 = vrot.slane %v862, %v1206
        %vm1208 = vcmask 1041409
        %v1209 = vsel %vm1208, %v959, %v955
        %vm1210 = vcmask 1042434
        %v1211 = vsel %vm1210, %v963, %v1209
        %vm1212 = vcmask 1043459
        %v1213 = vsel %vm1212, %v967, %v1211
        %vm1214 = vcmask 1044484
        %v1215 = vsel %vm1214, %v971, %v1213
        %vm1216 = vcmask 1045509
        %v1217 = vsel %vm1216, %v975, %v1215
        %vm1218 = vcmask 1046534
        %v1219 = vsel %vm1218, %v979, %v1217
        %vm1220 = vcmask 1047559
        %v1221 = vsel %vm1220, %v983, %v1219
        %v1222 = vsel %vm1208, %v991, %v987
        %v1223 = vsel %vm1210, %v995, %v1222
        %v1224 = vsel %vm1212, %v999, %v1223
        %v1225 = vsel %vm1214, %v1003, %v1224
        %v1226 = vsel %vm1216, %v1007, %v1225
        %v1227 = vsel %vm1218, %v1011, %v1226
        %v1228 = vsel %vm1220, %v1015, %v1227
        %v1229 = vsel %vm1208, %v1023, %v1019
        %v1230 = vsel %vm1210, %v1027, %v1229
        %v1231 = vsel %vm1212, %v1031, %v1230
        %v1232 = vsel %vm1214, %v1035, %v1231
        %v1233 = vsel %vm1216, %v1039, %v1232
        %v1234 = vsel %vm1218, %v1043, %v1233
        %v1235 = vsel %vm1220, %v1047, %v1234
        %v1236 = vsel %vm1208, %v1055, %v1051
        %v1237 = vsel %vm1210, %v1059, %v1236
        %v1238 = vsel %vm1212, %v1063, %v1237
        %v1239 = vsel %vm1214, %v1067, %v1238
        %v1240 = vsel %vm1216, %v1071, %v1239
        %v1241 = vsel %vm1218, %v1075, %v1240
        %v1242 = vsel %vm1220, %v1079, %v1241
        %v1243 = vsel %vm1208, %v1087, %v1083
        %v1244 = vsel %vm1210, %v1091, %v1243
        %v1245 = vsel %vm1212, %v1095, %v1244
        %v1246 = vsel %vm1214, %v1099, %v1245
        %v1247 = vsel %vm1216, %v1103, %v1246
        %v1248 = vsel %vm1218, %v1107, %v1247
        %v1249 = vsel %vm1220, %v1111, %v1248
        %v1250 = vsel %vm1208, %v1119, %v1115
        %v1251 = vsel %vm1210, %v1123, %v1250
        %v1252 = vsel %vm1212, %v1127, %v1251
        %v1253 = vsel %vm1214, %v1131, %v1252
        %v1254 = vsel %vm1216, %v1135, %v1253
        %v1255 = vsel %vm1218, %v1139, %v1254
        %v1256 = vsel %vm1220, %v1143, %v1255
        %v1257 = vsel %vm1208, %v1151, %v1147
        %v1258 = vsel %vm1210, %v1155, %v1257
        %v1259 = vsel %vm1212, %v1159, %v1258
        %v1260 = vsel %vm1214, %v1163, %v1259
        %v1261 = vsel %vm1216, %v1167, %v1260
        %v1262 = vsel %vm1218, %v1171, %v1261
        %v1263 = vsel %vm1220, %v1175, %v1262
        %v1264 = vsel %vm1208, %v1183, %v1179
        %v1265 = vsel %vm1210, %v1187, %v1264
        %v1266 = vsel %vm1212, %v1191, %v1265
        %v1267 = vsel %vm1214, %v1195, %v1266
        %v1268 = vsel %vm1216, %v1199, %v1267
        %v1269 = vsel %vm1218, %v1203, %v1268
        %v1270 = vsel %vm1220, %v1207, %v1269
        %1279 = vst.msk [vmem:[%s870 + $0x1] sm:$0xff] %vm863, %v1221
        %1280 = vst.msk [vmem:[%s870 + $0x11] sm:$0xff] %vm863, %v1228
        %1281 = vst.msk [vmem:[%s870 + $0x21] sm:$0xff] %vm863, %v1235
        %1282 = vst.msk [vmem:[%s870 + $0x31] sm:$0xff] %vm863, %v1242
        %1283 = vst.msk [vmem:[%s870 + $0x41] sm:$0xff] %vm863, %v1249
        %1284 = vst.msk [vmem:[%s870 + $0x51] sm:$0xff] %vm863, %v1256
        %1285 = vst.msk [vmem:[%s870 + $0x61] sm:$0xff] %vm863, %v1263
        %1286 = vst.msk [vmem:[%s870 + $0x71] sm:$0xff] %vm863, %v1270
        %v1287 = vld [vmem:[#allocation2] sm:$0xff]
        %v1288 = vld [vmem:[#allocation2 + $0x10] sm:$0xff]
        %v1289 = vld [vmem:[#allocation2 + $0x20] sm:$0xff]
        %v1290 = vld [vmem:[#allocation2 + $0x30] sm:$0xff]
        %v1291 = vld [vmem:[#allocation2 + $0x40] sm:$0xff]
        %v1292 = vld [vmem:[#allocation2 + $0x50] sm:$0xff]
        %v1293 = vld [vmem:[#allocation2 + $0x60] sm:$0xff]
        %v1294 = vld [vmem:[#allocation2 + $0x70] sm:$0xff]
        %v1295 = vld [vmem:[#allocation2 + $0x1] sm:$0xff]
        %v1296 = vld [vmem:[#allocation2 + $0x11] sm:$0xff]
        %v1297 = vld [vmem:[#allocation2 + $0x21] sm:$0xff]
        %v1298 = vld [vmem:[#allocation2 + $0x31] sm:$0xff]
        %v1299 = vld [vmem:[#allocation2 + $0x41] sm:$0xff]
        %v1300 = vld [vmem:[#allocation2 + $0x51] sm:$0xff]
        %v1301 = vld [vmem:[#allocation2 + $0x61] sm:$0xff]
        %v1302 = vld [vmem:[#allocation2 + $0x71] sm:$0xff]
        %v1303 = vld [vmem:[#allocation2 + $0x2] sm:$0xff]
        %v1304 = vld [vmem:[#allocation2 + $0x12] sm:$0xff]
        %v1305 = vld [vmem:[#allocation2 + $0x22] sm:$0xff]
        %v1306 = vld [vmem:[#allocation2 + $0x32] sm:$0xff]
        %v1307 = vld [vmem:[#allocation2 + $0x42] sm:$0xff]
        %v1308 = vld [vmem:[#allocation2 + $0x52] sm:$0xff]
        %v1309 = vld [vmem:[#allocation2 + $0x62] sm:$0xff]
        %v1310 = vld [vmem:[#allocation2 + $0x72] sm:$0xff]
        %v1311 = vld [vmem:[%s870] sm:$0xff]
        %v1312 = vld [vmem:[%s870 + $0x10] sm:$0xff]
        %v1313 = vld [vmem:[%s870 + $0x20] sm:$0xff]
        %v1314 = vld [vmem:[%s870 + $0x30] sm:$0xff]
        %v1315 = vld [vmem:[%s870 + $0x40] sm:$0xff]
        %v1316 = vld [vmem:[%s870 + $0x50] sm:$0xff]
        %v1317 = vld [vmem:[%s870 + $0x60] sm:$0xff]
        %v1318 = vld [vmem:[%s870 + $0x70] sm:$0xff]
        %v1319 = vld [vmem:[%s870 + $0x1] sm:$0xff]
        %v1320 = vld [vmem:[%s870 + $0x11] sm:$0xff]
        %v1321 = vld [vmem:[%s870 + $0x21] sm:$0xff]
        %v1322 = vld [vmem:[%s870 + $0x31] sm:$0xff]
        %v1323 = vld [vmem:[%s870 + $0x41] sm:$0xff]
        %v1324 = vld [vmem:[%s870 + $0x51] sm:$0xff]
        %v1325 = vld [vmem:[%s870 + $0x61] sm:$0xff]
        %v1326 = vld [vmem:[%s870 + $0x71] sm:$0xff]
        %v1327 = vld [vmem:[%s870 + $0x2] sm:$0xff]
        %v1328 = vld [vmem:[%s870 + $0x12] sm:$0xff]
        %v1329 = vld [vmem:[%s870 + $0x22] sm:$0xff]
        %v1330 = vld [vmem:[%s870 + $0x32] sm:$0xff]
        %v1331 = vld [vmem:[%s870 + $0x42] sm:$0xff]
        %v1332 = vld [vmem:[%s870 + $0x52] sm:$0xff]
        %v1333 = vld [vmem:[%s870 + $0x62] sm:$0xff]
        %v1334 = vld [vmem:[%s870 + $0x72] sm:$0xff]
        %s1335 = scalar_lea.vmem [#allocation2], 32
        %v1336 = vld [vmem:[%s1335] sm:$0xff]
        %v1337 = vld [vmem:[%s1335 + $0x10] sm:$0xff]
        %v1338 = vld [vmem:[%s1335 + $0x20] sm:$0xff]
        %v1339 = vld [vmem:[%s1335 + $0x30] sm:$0xff]
        %v1340 = vld [vmem:[%s1335 + $0x40] sm:$0xff]
        %v1341 = vld [vmem:[%s1335 + $0x50] sm:$0xff]
        %v1342 = vld [vmem:[%s1335 + $0x60] sm:$0xff]
        %v1343 = vld [vmem:[%s1335 + $0x70] sm:$0xff]
        %v1344 = vld [vmem:[%s1335 + $0x1] sm:$0xff]
        %v1345 = vld [vmem:[%s1335 + $0x11] sm:$0xff]
        %v1346 = vld [vmem:[%s1335 + $0x21] sm:$0xff]
        %v1347 = vld [vmem:[%s1335 + $0x31] sm:$0xff]
        %v1348 = vld [vmem:[%s1335 + $0x41] sm:$0xff]
        %v1349 = vld [vmem:[%s1335 + $0x51] sm:$0xff]
        %v1350 = vld [vmem:[%s1335 + $0x61] sm:$0xff]
        %v1351 = vld [vmem:[%s1335 + $0x71] sm:$0xff]
        %v1352 = vld [vmem:[%s1335 + $0x2] sm:$0xff]
        %v1353 = vld [vmem:[%s1335 + $0x12] sm:$0xff]
        %v1354 = vld [vmem:[%s1335 + $0x22] sm:$0xff]
        %v1355 = vld [vmem:[%s1335 + $0x32] sm:$0xff]
        %v1356 = vld [vmem:[%s1335 + $0x42] sm:$0xff]
        %v1357 = vld [vmem:[%s1335 + $0x52] sm:$0xff]
        %v1358 = vld [vmem:[%s1335 + $0x62] sm:$0xff]
        %v1359 = vld [vmem:[%s1335 + $0x72] sm:$0xff]
        %1368 = vrot.lane.b32.xlu0 %v1295, 4
        %v1369 = vpop.permute.xlu0 %1368
        %1370 = vrot.lane.b32.xlu0 %v1296, 4
        %v1371 = vpop.permute.xlu0 %1370
        %1372 = vrot.lane.b32.xlu0 %v1297, 4
        %v1373 = vpop.permute.xlu0 %1372
        %1374 = vrot.lane.b32.xlu0 %v1298, 4
        %v1375 = vpop.permute.xlu0 %1374
        %1376 = vrot.lane.b32.xlu0 %v1299, 4
        %v1377 = vpop.permute.xlu0 %1376
        %1378 = vrot.lane.b32.xlu0 %v1300, 4
        %v1379 = vpop.permute.xlu0 %1378
        %1380 = vrot.lane.b32.xlu0 %v1301, 4
        %v1381 = vpop.permute.xlu0 %1380
        %1382 = vrot.lane.b32.xlu0 %v1302, 4
        %v1383 = vpop.permute.xlu0 %1382
        %1400 = vrot.lane.b32.xlu0 %v1303, 8
        %v1401 = vpop.permute.xlu0 %1400
        %1402 = vrot.lane.b32.xlu0 %v1304, 8
        %v1403 = vpop.permute.xlu0 %1402
        %1404 = vrot.lane.b32.xlu0 %v1305, 8
        %v1405 = vpop.permute.xlu0 %1404
        %1406 = vrot.lane.b32.xlu0 %v1306, 8
        %v1407 = vpop.permute.xlu0 %1406
        %1408 = vrot.lane.b32.xlu0 %v1307, 8
        %v1409 = vpop.permute.xlu0 %1408
        %1410 = vrot.lane.b32.xlu0 %v1308, 8
        %v1411 = vpop.permute.xlu0 %1410
        %1412 = vrot.lane.b32.xlu0 %v1309, 8
        %v1413 = vpop.permute.xlu0 %1412
        %1414 = vrot.lane.b32.xlu0 %v1310, 8
        %v1415 = vpop.permute.xlu0 %1414
        %1432 = vrot.lane.b32.xlu0 %v1311, 12
        %v1433 = vpop.permute.xlu0 %1432
        %1434 = vrot.lane.b32.xlu0 %v1312, 12
        %v1435 = vpop.permute.xlu0 %1434
        %1436 = vrot.lane.b32.xlu0 %v1313, 12
        %v1437 = vpop.permute.xlu0 %1436
        %1438 = vrot.lane.b32.xlu0 %v1314, 12
        %v1439 = vpop.permute.xlu0 %1438
        %1440 = vrot.lane.b32.xlu0 %v1315, 12
        %v1441 = vpop.permute.xlu0 %1440
        %1442 = vrot.lane.b32.xlu0 %v1316, 12
        %v1443 = vpop.permute.xlu0 %1442
        %1444 = vrot.lane.b32.xlu0 %v1317, 12
        %v1445 = vpop.permute.xlu0 %1444
        %1446 = vrot.lane.b32.xlu0 %v1318, 12
        %v1447 = vpop.permute.xlu0 %1446
        %1464 = vrot.lane.b32.xlu0 %v1319, 16
        %v1465 = vpop.permute.xlu0 %1464
        %1466 = vrot.lane.b32.xlu0 %v1320, 16
        %v1467 = vpop.permute.xlu0 %1466
        %1468 = vrot.lane.b32.xlu0 %v1321, 16
        %v1469 = vpop.permute.xlu0 %1468
        %1470 = vrot.lane.b32.xlu0 %v1322, 16
        %v1471 = vpop.permute.xlu0 %1470
        %1472 = vrot.lane.b32.xlu0 %v1323, 16
        %v1473 = vpop.permute.xlu0 %1472
        %1474 = vrot.lane.b32.xlu0 %v1324, 16
        %v1475 = vpop.permute.xlu0 %1474
        %1476 = vrot.lane.b32.xlu0 %v1325, 16
        %v1477 = vpop.permute.xlu0 %1476
        %1478 = vrot.lane.b32.xlu0 %v1326, 16
        %v1479 = vpop.permute.xlu0 %1478
        %1496 = vrot.lane.b32.xlu0 %v1327, 20
        %v1497 = vpop.permute.xlu0 %1496
        %1498 = vrot.lane.b32.xlu0 %v1328, 20
        %v1499 = vpop.permute.xlu0 %1498
        %1500 = vrot.lane.b32.xlu0 %v1329, 20
        %v1501 = vpop.permute.xlu0 %1500
        %1502 = vrot.lane.b32.xlu0 %v1330, 20
        %v1503 = vpop.permute.xlu0 %1502
        %1504 = vrot.lane.b32.xlu0 %v1331, 20
        %v1505 = vpop.permute.xlu0 %1504
        %1506 = vrot.lane.b32.xlu0 %v1332, 20
        %v1507 = vpop.permute.xlu0 %1506
        %1508 = vrot.lane.b32.xlu0 %v1333, 20
        %v1509 = vpop.permute.xlu0 %1508
        %1510 = vrot.lane.b32.xlu0 %v1334, 20
        %v1511 = vpop.permute.xlu0 %1510
        %1528 = vrot.lane.b32.xlu0 %v1336, 24
        %v1529 = vpop.permute.xlu0 %1528
        %1530 = vrot.lane.b32.xlu0 %v1337, 24
        %v1531 = vpop.permute.xlu0 %1530
        %1532 = vrot.lane.b32.xlu0 %v1338, 24
        %v1533 = vpop.permute.xlu0 %1532
        %1534 = vrot.lane.b32.xlu0 %v1339, 24
        %v1535 = vpop.permute.xlu0 %1534
        %1536 = vrot.lane.b32.xlu0 %v1340, 24
        %v1537 = vpop.permute.xlu0 %1536
        %1538 = vrot.lane.b32.xlu0 %v1341, 24
        %v1539 = vpop.permute.xlu0 %1538
        %1540 = vrot.lane.b32.xlu0 %v1342, 24
        %v1541 = vpop.permute.xlu0 %1540
        %1542 = vrot.lane.b32.xlu0 %v1343, 24
        %v1543 = vpop.permute.xlu0 %1542
        %1560 = vrot.lane.b32.xlu0 %v1344, 28
        %v1561 = vpop.permute.xlu0 %1560
        %1562 = vrot.lane.b32.xlu0 %v1345, 28
        %v1563 = vpop.permute.xlu0 %1562
        %1564 = vrot.lane.b32.xlu0 %v1346, 28
        %v1565 = vpop.permute.xlu0 %1564
        %1566 = vrot.lane.b32.xlu0 %v1347, 28
        %v1567 = vpop.permute.xlu0 %1566
        %1568 = vrot.lane.b32.xlu0 %v1348, 28
        %v1569 = vpop.permute.xlu0 %1568
        %1570 = vrot.lane.b32.xlu0 %v1349, 28
        %v1571 = vpop.permute.xlu0 %1570
        %1572 = vrot.lane.b32.xlu0 %v1350, 28
        %v1573 = vpop.permute.xlu0 %1572
        %1574 = vrot.lane.b32.xlu0 %v1351, 28
        %v1575 = vpop.permute.xlu0 %1574
        %1592 = vrot.lane.b32.xlu0 %v1352, 32
        %v1593 = vpop.permute.xlu0 %1592
        %1594 = vrot.lane.b32.xlu0 %v1353, 32
        %v1595 = vpop.permute.xlu0 %1594
        %1596 = vrot.lane.b32.xlu0 %v1354, 32
        %v1597 = vpop.permute.xlu0 %1596
        %1598 = vrot.lane.b32.xlu0 %v1355, 32
        %v1599 = vpop.permute.xlu0 %1598
        %1600 = vrot.lane.b32.xlu0 %v1356, 32
        %v1601 = vpop.permute.xlu0 %1600
        %1602 = vrot.lane.b32.xlu0 %v1357, 32
        %v1603 = vpop.permute.xlu0 %1602
        %1604 = vrot.lane.b32.xlu0 %v1358, 32
        %v1605 = vpop.permute.xlu0 %1604
        %1606 = vrot.lane.b32.xlu0 %v1359, 32
        %v1607 = vpop.permute.xlu0 %1606
        %v1616 = vsel %vm863, %v1287, %v1369
        %v1617 = vsel %vm863, %v1288, %v1371
        %v1618 = vsel %vm863, %v1289, %v1373
        %v1619 = vsel %vm863, %v1290, %v1375
        %v1620 = vsel %vm863, %v1291, %v1377
        %v1621 = vsel %vm863, %v1292, %v1379
        %v1622 = vsel %vm863, %v1293, %v1381
        %v1623 = vsel %vm863, %v1294, %v1383
        %vm1624 = vcmask 64512
        %v1625 = vsel %vm1624, %v1616, %v1401
        %v1626 = vsel %vm1624, %v1617, %v1403
        %v1627 = vsel %vm1624, %v1618, %v1405
        %v1628 = vsel %vm1624, %v1619, %v1407
        %v1629 = vsel %vm1624, %v1620, %v1409
        %v1630 = vsel %vm1624, %v1621, %v1411
        %v1631 = vsel %vm1624, %v1622, %v1413
        %v1632 = vsel %vm1624, %v1623, %v1415
        %vm1633 = vcmask 97280
        %v1634 = vsel %vm1633, %v1625, %v1433
        %v1635 = vsel %vm1633, %v1626, %v1435
        %v1636 = vsel %vm1633, %v1627, %v1437
        %v1637 = vsel %vm1633, %v1628, %v1439
        %v1638 = vsel %vm1633, %v1629, %v1441
        %v1639 = vsel %vm1633, %v1630, %v1443
        %v1640 = vsel %vm1633, %v1631, %v1445
        %v1641 = vsel %vm1633, %v1632, %v1447
        %vm1642 = vcmask 130048
        %v1643 = vsel %vm1642, %v1634, %v1465
        %v1644 = vsel %vm1642, %v1635, %v1467
        %v1645 = vsel %vm1642, %v1636, %v1469
        %v1646 = vsel %vm1642, %v1637, %v1471
        %v1647 = vsel %vm1642, %v1638, %v1473
        %v1648 = vsel %vm1642, %v1639, %v1475
        %v1649 = vsel %vm1642, %v1640, %v1477
        %v1650 = vsel %vm1642, %v1641, %v1479
        %vm1651 = vcmask 162816
        %v1652 = vsel %vm1651, %v1643, %v1497
        %v1653 = vsel %vm1651, %v1644, %v1499
        %v1654 = vsel %vm1651, %v1645, %v1501
        %v1655 = vsel %vm1651, %v1646, %v1503
        %v1656 = vsel %vm1651, %v1647, %v1505
        %v1657 = vsel %vm1651, %v1648, %v1507
        %v1658 = vsel %vm1651, %v1649, %v1509
        %v1659 = vsel %vm1651, %v1650, %v1511
        %vm1660 = vcmask 195584
        %v1661 = vsel %vm1660, %v1652, %v1529
        %v1662 = vsel %vm1660, %v1653, %v1531
        %v1663 = vsel %vm1660, %v1654, %v1533
        %v1664 = vsel %vm1660, %v1655, %v1535
        %v1665 = vsel %vm1660, %v1656, %v1537
        %v1666 = vsel %vm1660, %v1657, %v1539
        %v1667 = vsel %vm1660, %v1658, %v1541
        %v1668 = vsel %vm1660, %v1659, %v1543
        %vm1669 = vcmask 228352
        %v1670 = vsel %vm1669, %v1661, %v1561
        %v1671 = vsel %vm1669, %v1662, %v1563
        %v1672 = vsel %vm1669, %v1663, %v1565
        %v1673 = vsel %vm1669, %v1664, %v1567
        %v1674 = vsel %vm1669, %v1665, %v1569
        %v1675 = vsel %vm1669, %v1666, %v1571
        %v1676 = vsel %vm1669, %v1667, %v1573
        %v1677 = vsel %vm1669, %v1668, %v1575
        %vm1678 = vcmask 261120
        %v1679 = vsel %vm1678, %v1670, %v1593
        %v1680 = vsel %vm1678, %v1671, %v1595
        %v1681 = vsel %vm1678, %v1672, %v1597
        %v1682 = vsel %vm1678, %v1673, %v1599
        %v1683 = vsel %vm1678, %v1674, %v1601
        %v1684 = vsel %vm1678, %v1675, %v1603
        %v1685 = vsel %vm1678, %v1676, %v1605
        %v1686 = vsel %vm1678, %v1677, %v1607
        %v1687 = vld [vmem:[%s1] sm:$0xff]
        %v1688 = vld [vmem:[%s1 + $0x8] sm:$0xff]
        %v1689 = vld [vmem:[%s1 + $0x10] sm:$0xff]
        %v1690 = vld [vmem:[%s1 + $0x18] sm:$0xff]
        %v1691 = vld [vmem:[%s1 + $0x20] sm:$0xf]
        %v1692 = vld [vmem:[%s2] sm:$0x1]
        %v1694 = vlaneseq
        %v1695 = vshrl.u32 %v1694, 7
        %v1696 = vsub.s32 0, %v1695
        %v1697 = vrot.slane %v1692, %v1696
        %vm1699 = vcmask 293888
        %v1701 = vsel %vm1699, %v1679, 0
        %v1704 = vsel %vm1699, %v1680, 0
        %v1707 = vsel %vm1699, %v1681, 0
        %v1710 = vsel %vm1699, %v1682, 0
        %v1713 = vsel %vm1699, %v1683, 0
        %v1716 = vsel %vm1699, %v1684, 0
        %v1719 = vsel %vm1699, %v1685, 0
        %v1722 = vsel %vm1699, %v1686, 0
        %vm1724 = vcmask 1043456
        %v1726 = vsel %vm1724, %v1691, 0
        %1728 = vmatprep.subr.mxu0 0.0
        %1729 = vmatpush1.msra.mxu0 0.0
        %1730 = vmatprep.subr.mxu0 0.0
        %1731 = vmatpush1.msra.mxu0 0.0
        %1732 = vmatprep.subr.mxu0 0.0
        %1733 = vmatpush1.msra.mxu0 0.0
        %1734 = vmatprep.subr.mxu0 0.0
        %1735 = vmatpush1.msra.mxu0 0.0
        %1736 = vmatprep.subr.mxu0 0.0
        %1737 = vmatpush1.msra.mxu0 0.0
        %1738 = vmatprep.subr.mxu0 0.0
        %1739 = vmatpush1.msra.mxu0 0.0
        %1740 = vmatprep.subr.mxu0 0.0
        %1741 = vmatpush1.msra.mxu0 0.0
        %1742 = vmatprep.subr.mxu0 0.0
        %1743 = vmatpush1.msra.mxu0 0.0
        %1744 = vmatprep.subr.mxu0 0.0
        %1745 = vmatpush1.msra.mxu0 0.0
        %1746 = vmatprep.subr.mxu0 0.0
        %1747 = vmatpush1.msra.mxu0 0.0
        %1748 = vmatprep.subr.mxu0 0.0
        %1749 = vmatpush1.msra.mxu0 0.0
        %1750 = vmatprep.subr.mxu0 0.0
        %1751 = vmatpush1.msra.mxu0 %v1726
        %1752 = vmatprep.subr.mxu0 0.0
        %1753 = vmatpush1.msra.mxu0 %v1690
        %1754 = vmatprep.subr.mxu0 0.0
        %1755 = vmatpush1.msra.mxu0 %v1689
        %1756 = vmatprep.subr.mxu0 0.0
        %1757 = vmatpush1.msra.mxu0 %v1688
        %1758 = vmatprep.subr.mxu0 0.0
        %1759 = vmatpush1.msra.mxu0 %v1687
        %1760 = vmatprep.subr.mxu0 0.0
        %1761 = vmatpush2.msra.mxu0 0.0
        %1762 = vmatprep.subr.mxu0 0.0
        %1763 = vmatpush2.msra.mxu0 0.0
        %1764 = vmatprep.subr.mxu0 0.0
        %1765 = vmatpush2.msra.mxu0 0.0
        %1766 = vmatprep.subr.mxu0 0.0
        %1767 = vmatpush2.msra.mxu0 0.0
        %1768 = vmatprep.subr.mxu0 0.0
        %1769 = vmatpush2.msra.mxu0 0.0
        %1770 = vmatprep.subr.mxu0 0.0
        %1771 = vmatpush2.msra.mxu0 0.0
        %1772 = vmatprep.subr.mxu0 0.0
        %1773 = vmatpush2.msra.mxu0 0.0
        %1774 = vmatprep.subr.mxu0 0.0
        %1775 = vmatpush2.msra.mxu0 0.0
        %1776 = vmatprep.subr.mxu0 0.0
        %1777 = vmatpush2.msra.mxu0 0.0
        %1778 = vmatprep.subr.mxu0 0.0
        %1779 = vmatpush2.msra.mxu0 0.0
        %1780 = vmatprep.subr.mxu0 0.0
        %1781 = vmatpush2.msra.mxu0 0.0
        %1782 = vmatprep.subr.mxu0 0.0
        %1783 = vmatpush2.msra.mxu0 0.0
        %1784 = vmatprep.subr.mxu0 0.0
        %1785 = vmatpush2.msra.mxu0 0.0
        %1786 = vmatprep.subr.mxu0 0.0
        %1787 = vmatpush2.msra.mxu0 0.0
        %1788 = vmatprep.subr.mxu0 0.0
        %1789 = vmatpush2.msra.mxu0 0.0
        %1790 = vmatprep.subr.mxu0 0.0
        %1791 = vmatpush2.msra.mxu0 0.0
        %1792 = vmatprep.mubr.f32.mxu0 0.0
        %1793 = vmatmul.mubr.f32.gmra.mxu0 %v1701
        %v1794 = vpop.f32.mrf.mxu0
        %v1795 = vadd.f32 %v1697, %v1794
        %v1796 = vpop.f32.mrf.mxu0
        %1797 = vmatprep.mubr.f32.mxu0 0.0
        %1798 = vmatmul.mubr.f32.gmra.mxu0 %v1704
        %v1799 = vpop.f32.mrf.mxu0
        %v1800 = vadd.f32 %v1697, %v1799
        %v1801 = vpop.f32.mrf.mxu0
        %1802 = vmatprep.mubr.f32.mxu0 0.0
        %1803 = vmatmul.mubr.f32.gmra.mxu0 %v1707
        %v1804 = vpop.f32.mrf.mxu0
        %v1805 = vadd.f32 %v1697, %v1804
        %v1806 = vpop.f32.mrf.mxu0
        %1807 = vmatprep.mubr.f32.mxu0 0.0
        %1808 = vmatmul.mubr.f32.gmra.mxu0 %v1710
        %v1809 = vpop.f32.mrf.mxu0
        %v1810 = vadd.f32 %v1697, %v1809
        %v1811 = vpop.f32.mrf.mxu0
        %1812 = vmatprep.mubr.f32.mxu0 0.0
        %1813 = vmatmul.mubr.f32.gmra.mxu0 %v1713
        %v1814 = vpop.f32.mrf.mxu0
        %v1815 = vadd.f32 %v1697, %v1814
        %v1816 = vpop.f32.mrf.mxu0
        %1817 = vmatprep.mubr.f32.mxu0 0.0
        %1818 = vmatmul.mubr.f32.gmra.mxu0 %v1716
        %v1819 = vpop.f32.mrf.mxu0
        %v1820 = vadd.f32 %v1697, %v1819
        %v1821 = vpop.f32.mrf.mxu0
        %1822 = vmatprep.mubr.f32.mxu0 0.0
        %1823 = vmatmul.mubr.f32.gmra.mxu0 %v1719
        %v1824 = vpop.f32.mrf.mxu0
        %v1825 = vadd.f32 %v1697, %v1824
        %v1826 = vpop.f32.mrf.mxu0
        %1827 = vmatprep.mubr.f32.mxu0 0.0
        %1828 = vmatmul.mubr.f32.gmra.mxu0 %v1722
        %v1829 = vpop.f32.mrf.mxu0
        %v1830 = vadd.f32 %v1697, %v1829
        %v1831 = vpop.f32.mrf.mxu0
        %1832 = vdwg.mxu0
        %1833 = vst [vmem:[%s194] sm:$0xff] %v1795
        %1834 = vst [vmem:[%s194 + $0x8] sm:$0xff] %v1800
        %1835 = vst [vmem:[%s194 + $0x10] sm:$0xff] %v1805
        %1836 = vst [vmem:[%s194 + $0x18] sm:$0xff] %v1810
        %1837 = vst [vmem:[%s194 + $0x20] sm:$0xff] %v1815
        %1838 = vst [vmem:[%s194 + $0x28] sm:$0xff] %v1820
        %1839 = vst [vmem:[%s194 + $0x30] sm:$0xff] %v1825
        %1840 = vst [vmem:[%s194 + $0x38] sm:$0xff] %v1830
        %v1841 = vadd.f32 %v1795, %v1800
        %v1842 = vadd.f32 %v1841, %v1805
        %v1843 = vadd.f32 %v1842, %v1810
        %v1844 = vadd.f32 %v1843, %v1815
        %v1845 = vadd.f32 %v1844, %v1820
        %v1846 = vadd.f32 %v1845, %v1825
        %v1847 = vadd.f32 %v1846, %v1830
        %v1848 = vrot.slane %v1847, 4
        %v1849 = vadd.f32 %v1847, %v1848
        %v1850 = vrot.slane %v1849, 2
        %v1851 = vadd.f32 %v1849, %v1850
        %v1852 = vrot.slane %v1851, 1
        %v1853 = vadd.f32 %v1851, %v1852
        %v1854 = vmul.f32 %v1795, %v1795
        %v1855 = vmul.f32 %v1800, %v1800
        %v1856 = vmul.f32 %v1805, %v1805
        %v1857 = vmul.f32 %v1810, %v1810
        %v1858 = vmul.f32 %v1815, %v1815
        %v1859 = vmul.f32 %v1820, %v1820
        %v1860 = vmul.f32 %v1825, %v1825
        %v1861 = vmul.f32 %v1830, %v1830
        %v1862 = vadd.f32 %v1854, %v1855
        %v1863 = vadd.f32 %v1862, %v1856
        %v1864 = vadd.f32 %v1863, %v1857
        %v1865 = vadd.f32 %v1864, %v1858
        %v1866 = vadd.f32 %v1865, %v1859
        %v1867 = vadd.f32 %v1866, %v1860
        %v1868 = vadd.f32 %v1867, %v1861
        %v1869 = vrot.slane %v1868, 4
        %v1870 = vadd.f32 %v1868, %v1869
        %v1871 = vrot.slane %v1870, 2
        %v1872 = vadd.f32 %v1870, %v1871
        %v1873 = vrot.slane %v1872, 1
        %v1874 = vadd.f32 %v1872, %v1873
        %vm1875 = vcmask 1040384
        %v1876 = vsel %vm1875, %v1853, %v1874
        %1877 = vst [vmem:[%s201] sm:$0x3] %v1876
        %s1878 = sand.u32 %s98, 1
        %s1879 = scalar_lea.sflag [#allocation4], %s1878
        %s1880 = sand.u32 %s98, 1
        %s1881 = smul.addr %s1880, 64
        %s1882 = scalar_lea.vmem [#allocation3], %s1881
        %s1883 = sand.u32 %s124, 1
        %s1884 = scalar_lea.sflag [#allocation6], %s1883
        %s1885 = sand.u32 %s124, 1
        %s1886 = smul.addr %s1885, 2
        %s1887 = scalar_lea.vmem [#allocation5], %s1886
        // Predicated region
        $region33: #{tpu_custom_call.1} parent=31 // pred_check
          %p1888 = pneg %p108
        $region34: #{tpu_custom_call.1} parent=31 // pred_check_branch
          %1890 = sbr.rel (%p1888) target = $region36
        $region35: #{tpu_custom_call.1} parent=31 // pred_region
          %s1892 = ssub.s32 1024, 1024
          %1893 = vsyncadd %s1879, %s1892
          %s1894 = smul.addr %s22, 8
          %s1895 = smul.addr %s1894, 128
          %s1896 = scalar_lea.hbm %s3, %s1895
          %s1897 = sshll.u32 %s1882, 4
          %s1898 = int_to_ptr.vmem [resolvable:$true] %s1897
          %1903 = dma.vmem_to_hbm [thread:$0]  %s1898, 1024, %s1896, %s1879, 128, 128, 8
        $region36: #{tpu_custom_call.1} parent=31 // pred_fallthru
          _
        // Predicated region
        $region37: #{tpu_custom_call.1} parent=31 // pred_check
          %p1904 = pneg %p134
        $region38: #{tpu_custom_call.1} parent=31 // pred_check_branch
          %1906 = sbr.rel (%p1904) target = $region40
        $region39: #{tpu_custom_call.1} parent=31 // pred_region
          %s1908 = ssub.s32 32, 32
          %1909 = vsyncadd %s1884, %s1908
          %s1910 = smul.addr %s22, 32
          %s1911 = scalar_lea.hbm %s4, %s1910
          %s1913 = sshll.u32 %s1887, 4
          %s1914 = int_to_ptr.vmem [resolvable:$true] %s1913
          %1916 = dma.vmem_to_hbm [thread:$0]  %s1914, 32, %s1911, %s1884
        $region40: #{tpu_custom_call.1} parent=31 // pred_fallthru
          _
      $region32: #{tpu_custom_call.1} parent=5 // pred_fallthru
        _
      %p1917 = scmp.le.s32.totalorder 2, %s17
      // Predicated region
      $region41: #{tpu_custom_call.1} parent=5 // pred_check
        %p1918 = pneg %p1917
      $region42: #{tpu_custom_call.1} parent=5 // pred_check_branch
        %1920 = sbr.rel (%p1918) target = $region44
      $region43: #{tpu_custom_call.1} parent=5 // pred_region
        %s1921 = ssub.s32 %s17, 2
        // Predicated region
        $region45: #{tpu_custom_call.1} parent=43 // pred_check
          %p1922 = pneg %p114
        $region46: #{tpu_custom_call.1} parent=43 // pred_check_branch
          %1924 = sbr.rel (%p1922) target = $region48
        $region47: #{tpu_custom_call.1} parent=43 // pred_region
          %s1925 = sand.u32 %s99, 1
          %s1926 = scalar_lea.sflag [#allocation4], %s1925
          %s1927 = sand.u32 %s99, 1
          %s1928 = smul.addr %s1927, 64
          %s1929 = scalar_lea.vmem [#allocation3], %s1928
          %1930 = dma.done %s1926, 1024
        $region48: #{tpu_custom_call.1} parent=43 // pred_fallthru
          _
        // Predicated region
        $region49: #{tpu_custom_call.1} parent=43 // pred_check
          %p1931 = pneg %p140
        $region50: #{tpu_custom_call.1} parent=43 // pred_check_branch
          %1933 = sbr.rel (%p1931) target = $region52
        $region51: #{tpu_custom_call.1} parent=43 // pred_region
          %s1934 = sand.u32 %s125, 1
          %s1935 = scalar_lea.sflag [#allocation6], %s1934
          %s1936 = sand.u32 %s125, 1
          %s1937 = smul.addr %s1936, 2
          %s1938 = scalar_lea.vmem [#allocation5], %s1937
          %1939 = dma.done %s1935, 32
        $region52: #{tpu_custom_call.1} parent=43 // pred_fallthru
          _
      $region44: #{tpu_custom_call.1} parent=5 // pred_fallthru
        _
    $region6: #{tpu_custom_call.1} parent=1 // loop_footer
      %s21 = sadd.s32 1, %s17
    $region7: #{tpu_custom_call.1} parent=1 // loop_footer_branch
      %16 = sbr.rel target = $region3
    $region8: #{tpu_custom_call.1} parent=1 // loop_exit
      _
    %1940 = vsyncpa [#allocation4], 1
    %s1941 = scalar_lea.sflag [#allocation4], 1
    %1942 = vsyncpa %s1941, 1
    %1943 = vsyncpa [#allocation6], 1
    %s1944 = scalar_lea.sflag [#allocation6], 1
    %1945 = vsyncpa %s1944, 1

</llo_original>
